<compile_context>
chip_gen: v7x
topology: tpu7x:2x2x1
jax: 0.10.0
libtpu: 0.0.40
codegen_flags: <defaults>
</compile_context>

<pallas_src>
import jax
import jax.numpy as jnp
import numpy as np
from jax.experimental import pallas as pl
from jax.experimental.pallas import tpu as pltpu


def _round_up(a, b):
    return (a + b - 1) // b * b


def _sublane_multiple(dtype):
    # f32 -> 8, bf16 -> 16, int8/fp8 -> 32 (sub-32-bit dtypes pack along sublanes).
    return max(8, 32 // jnp.dtype(dtype).itemsize)


def _vmem_block_bytes(shape, dtype):
    # VMEM footprint of one block, including (sublane, 128)-lane tile padding.
    s = [int(d) for d in shape]
    s[-1] = _round_up(s[-1], 128)
    if len(s) >= 2:
        s[-2] = _round_up(s[-2], _sublane_multiple(dtype))
    n = 1
    for d in s:
        n *= d
    return n * jnp.dtype(dtype).itemsize


# ---------------------------------------------------------------------------
# Kernel: conv as kh*kw tap matmuls (f32 accumulation) + BN scale/shift + ReLU
# ---------------------------------------------------------------------------

def _make_conv_bn_relu_kernel(kh, kw, stride, th, Wo, C_in, Cop):
    taps = kh * kw

    def kernel(x_ref, w_ref, scale_ref, shift_ref, o_ref):
        # x_ref:     (Hp, Wp, C_in)      zero-padded NHWC input, one batch image
        # w_ref:     (kh*kw, C_in, Cop)  conv weight, tap-major, C_out padded to 128
        # scale_ref: (1, Cop)            gamma / sqrt(var + eps)          (f32)
        # shift_ref: (1, Cop)            (bias - mean) * scale + beta     (f32)
        # o_ref:     (th, Wo, Cop)       NHWC output row-tile
        r = pl.program_id(1)
        row0 = pl.multiple_of(r * (th * stride), th * stride)
        acc = jnp.zeros((th * Wo, Cop), jnp.float32)
        for t in range(taps):                       # static unroll (kh*kw is small)
            di, dj = t // kw, t % kw
            if stride == 1:
                patch = x_ref[pl.ds(row0 + di, th), pl.ds(dj, Wo), :]
            else:  # strided taps (not exercised by the demo)
                patch = x_ref[pl.ds(row0 + di, th, stride),
                              pl.ds(dj, Wo, stride), :]
            acc = acc + jnp.dot(patch.reshape(th * Wo, C_in), w_ref[t],
                                preferred_element_type=jnp.float32)
        y = jnp.maximum(acc * scale_ref[...] + shift_ref[...], 0.0)
        o_ref[...] = y.reshape(th, Wo, Cop).astype(o_ref.dtype)

    return kernel


# ---------------------------------------------------------------------------
# Wrapper: ConvBlock2D forward (eval-mode BN folded into scale/shift)
# ---------------------------------------------------------------------------

def conv_block_2d(x, weight, bias, gamma, beta, running_mean, running_var,
                  *, stride=1, padding=1, eps=1e-5, compute_dtype=None,
                  out_format="NCHW", training=False, target_rows=1024):
    if training:
        raise NotImplementedError(
            "Only eval-mode BatchNorm (running statistics) is implemented.")
    N, C_in, H, W = x.shape
    C_out, C_in_w, kh, kw = weight.shape
    assert C_in_w == C_in
    cdt = jnp.dtype(compute_dtype) if compute_dtype is not None else jnp.dtype(x.dtype)

    Ho = (H + 2 * padding - kh) // stride + 1
    Wo = (W + 2 * padding - kw) // stride + 1

    # Row tile: large enough to amortize the ~0.35us/step pipeline overhead, but
    # split into >= 2 tiles so the row axis can shard across v7x's two TCs.
    th = max(1, min(Ho, max(1, target_rows // max(Wo, 1))))
    R = -(-Ho // th)
    if R < 2 and Ho >= 2:
        th = -(-Ho // 2)
        R = -(-Ho // th)
    Ho_pad = R * th

    # Zero-padded NHWC input, tall enough that padded output rows stay in bounds
    # (no OOB VMEM reads for the garbage rows of the last tile).
    Hp_needed = (Ho_pad - 1) * stride + kh
    pad_bot = max(padding, Hp_needed - H - padding)
    x_nhwc = jnp.transpose(x, (0, 2, 3, 1))
    x_pad = jnp.pad(x_nhwc,
                    ((0, 0), (padding, pad_bot), (padding, padding), (0, 0)))
    x_pad = x_pad.astype(cdt)
    Hp, Wp = int(x_pad.shape[1]), int(x_pad.shape[2])

    # Lane-dense output channels: pad C_out to 128 (unmasked stores, full MXU cols).
    Cop = _round_up(C_out, 128)
    w_r = jnp.transpose(weight, (2, 3, 1, 0)).reshape(kh * kw, C_in, C_out)
    if Cop != C_out:
        w_r = jnp.pad(w_r, ((0, 0), (0, 0), (0, Cop - C_out)))
    w_r = w_r.astype(cdt)

    # Fold conv bias + eval-mode BatchNorm into per-channel scale/shift (f32).
    inv_std = jax.lax.rsqrt(running_var.astype(jnp.float32) + eps)
    scale = gamma.astype(jnp.float32) * inv_std
    shift = (bias.astype(jnp.float32)
             - running_mean.astype(jnp.float32)) * scale + beta.astype(jnp.float32)
    scale2 = jnp.zeros((1, Cop), jnp.float32).at[0, :C_out].set(scale)
    shift2 = jnp.zeros((1, Cop), jnp.float32).at[0, :C_out].set(shift)

    kernel = _make_conv_bn_relu_kernel(kh, kw, stride, th, Wo, C_in, Cop)

    # VMEM budget from real block footprints (double-buffered), clamped to 32 MiB
    # so it is safe on v7x's 64 MiB physical VMEM as well as v5e/v6e.
    # (NOTE: the constant-index weight/scale/shift could be single-buffered via
    #  pipeline_mode=pl.Buffered(1) to reclaim VMEM for very large weights.)
    needed = 2 * (_vmem_block_bytes((Hp, Wp, C_in), cdt)
                  + _vmem_block_bytes((kh * kw, C_in, Cop), cdt)
                  + _vmem_block_bytes((th, Wo, Cop), x.dtype)
                  + 2 * _vmem_block_bytes((1, Cop), jnp.float32)) + (1 << 20)
    vmem_limit = int(min(max(needed, 16 << 20), 32 << 20))

    itemsize = jnp.dtype(cdt).itemsize
    flops = 2 * N * Ho_pad * Wo * (C_in * kh * kw) * Cop
    bytes_accessed = (x_pad.size * itemsize + w_r.size * itemsize
                      + 2 * Cop * 4
                      + N * Ho_pad * Wo * Cop * jnp.dtype(x.dtype).itemsize)

    out = pl.pallas_call(
        kernel,
        out_shape=jax.ShapeDtypeStruct((N, Ho_pad, Wo, Cop), x.dtype),
        grid=(N, R),
        in_specs=[
            # full padded image per batch, resident across the row-tile axis
            pl.BlockSpec((None, Hp, Wp, C_in), lambda n, r: (n, 0, 0, 0)),
            # conv weight / BN scale / BN shift: resident (constant index map)
            pl.BlockSpec((kh * kw, C_in, Cop), lambda n, r: (0, 0, 0)),
            pl.BlockSpec((1, Cop), lambda n, r: (0, 0)),
            pl.BlockSpec((1, Cop), lambda n, r: (0, 0)),
        ],
        out_specs=pl.BlockSpec((None, th, Wo, Cop), lambda n, r: (n, r, 0, 0)),
        compiler_params=pltpu.CompilerParams(
            dimension_semantics=("parallel", "parallel"),
            vmem_limit_bytes=vmem_limit,
        ),
        cost_estimate=pl.CostEstimate(
            flops=int(flops), transcendentals=0,
            bytes_accessed=int(bytes_accessed)),
    )(x_pad, w_r, scale2, shift2)

    out = out[:, :Ho, :, :C_out]          # drop row-tile and channel padding
    if out_format == "NHWC":
        return out
    # TODO(synk): downstream consumers that accept NHWC can skip this transpose
    # pass (a full-output HBM read+write in XLA) by requesting out_format="NHWC".
    return jnp.transpose(out, (0, 3, 1, 2))


# ---------------------------------------------------------------------------
# Demo / correctness check
# ---------------------------------------------------------------------------

if __name__ == "__main__":
    key = jax.random.PRNGKey(0)
    k_x, k_w, k_b, k_g, k_be, k_m, k_v = jax.random.split(key, 7)

    N, C_in, H, W = 2, 4, 16, 16
    C_out, ksz, stride, padding = 8, 3, 1, 1
    eps = 1e-5

    x = jax.random.normal(k_x, (N, C_in, H, W), dtype=jnp.float32)
    weight = jax.random.normal(k_w, (C_out, C_in, ksz, ksz), dtype=jnp.float32) * 0.1
    bias = jax.random.normal(k_b, (C_out,), dtype=jnp.float32) * 0.1
    gamma = jax.random.uniform(k_g, (C_out,), minval=0.5, maxval=1.5)
    beta = jax.random.normal(k_be, (C_out,), dtype=jnp.float32) * 0.1
    running_mean = jax.random.normal(k_m, (C_out,), dtype=jnp.float32) * 0.1
    running_var = jax.random.uniform(k_v, (C_out,), minval=0.5, maxval=1.5)

    y = conv_block_2d(x, weight, bias, gamma, beta, running_mean, running_var,
                      stride=stride, padding=padding, eps=eps)
    jax.block_until_ready(y)

    # Pure-JAX reference (eval-mode BatchNorm), same semantics as the torch module.
    conv = jax.lax.conv_general_dilated(
        x, weight, window_strides=(stride, stride),
        padding=((padding, padding), (padding, padding)),
        dimension_numbers=("NCHW", "OIHW", "NCHW"))
    conv = conv + bias[None, :, None, None]
    bn = (conv - running_mean[None, :, None, None]) * jax.lax.rsqrt(
        running_var[None, :, None, None] + eps)
    bn = bn * gamma[None, :, None, None] + beta[None, :, None, None]
    ref = jnp.maximum(bn, 0.0)

    # Tolerance covers the difference between the in-kernel MXU f32 matmul path
    # and XLA's default-precision conv path on real TPU hardware. A bf16 operand
    # path (compute_dtype=jnp.bfloat16) should be gated with its own tolerance.
    np.testing.assert_allclose(np.asarray(y), np.asarray(ref), rtol=2e-2, atol=2e-2)

    print("KERNEL_OK")
</pallas_src>

<mosaic_0001>
module attributes {stable_mosaic.version = 11 : i64} {
  func.func @kernel(%arg0: i32, %arg1: i32, %arg2: memref<1x18x18x4xf32, #tpu.memory_space<vmem>>, %arg3: memref<9x4x128xf32, #tpu.memory_space<vmem>>, %arg4: memref<1x128xf32, #tpu.memory_space<vmem>>, %arg5: memref<1x128xf32, #tpu.memory_space<vmem>>, %arg6: memref<1x8x16x128xf32, #tpu.memory_space<vmem>>) attributes {dimension_semantics = [#tpu.dimension_semantics<parallel>, #tpu.dimension_semantics<parallel>], iteration_bounds = array<i64: 2, 2>, scalar_prefetch = 0 : i64, scratch_operands = 0 : i64, tpu.core_type = #tpu.core_type<tc>, window_params = [{transform_indices = @transform_0, window_bounds = array<i64: 1, 18, 18, 4>}, {pipeline_mode = #tpu.pipeline_mode<synchronous>, transform_indices = @transform_1, window_bounds = array<i64: 9, 4, 128>}, {pipeline_mode = #tpu.pipeline_mode<synchronous>, transform_indices = @transform_2, window_bounds = array<i64: 1, 128>}, {pipeline_mode = #tpu.pipeline_mode<synchronous>, transform_indices = @transform_3, window_bounds = array<i64: 1, 128>}, {transform_indices = @transform_4, window_bounds = array<i64: 1, 8, 16, 128>}]} {
    %c8_i32 = arith.constant 8 : i32
    %0 = arith.muli %arg1, %c8_i32 : i32
    %1 = tpu.assume_multiple %0, 8 : i32
    %cst = arith.constant 0.000000e+00 : f32
    %2 = vector.broadcast %cst : f32 to vector<128x128xf32>
    %c0_i32 = arith.constant 0 : i32
    %3 = arith.addi %1, %c0_i32 : i32
    %c0 = arith.constant 0 : index
    %4 = arith.index_cast %3 : i32 to index
    %c0_0 = arith.constant 0 : index
    %c0_1 = arith.constant 0 : index
    %5 = vector.load %arg2[%c0, %4, %c0_0, %c0_1] : memref<1x18x18x4xf32, #tpu.memory_space<vmem>>, vector<1x8x16x4xf32>
    %6 = vector.shape_cast %5 : vector<1x8x16x4xf32> to vector<8x16x4xf32>
    %7 = vector.shape_cast %6 : vector<8x16x4xf32> to vector<128x4xf32>
    %c0_2 = arith.constant 0 : index
    %c0_3 = arith.constant 0 : index
    %c0_4 = arith.constant 0 : index
    %8 = vector.load %arg3[%c0_2, %c0_3, %c0_4] : memref<9x4x128xf32, #tpu.memory_space<vmem>>, vector<1x4x128xf32>
    %9 = vector.shape_cast %8 : vector<1x4x128xf32> to vector<4x128xf32>
    %cst_5 = arith.constant dense<0.000000e+00> : vector<128x128xf32>
    %10 = tpu.matmul %7, %9, %cst_5 {dimension_numbers = #tpu.dot_dimension_numbers<[1], [0], [0], [1], [0, 0, 1, 1], [], []>} : vector<128x4xf32>, vector<4x128xf32>, vector<128x128xf32> -> vector<128x128xf32>
    %11 = arith.addf %2, %10 : vector<128x128xf32>
    %c0_i32_6 = arith.constant 0 : i32
    %12 = arith.addi %1, %c0_i32_6 : i32
    %c0_7 = arith.constant 0 : index
    %13 = arith.index_cast %12 : i32 to index
    %c1 = arith.constant 1 : index
    %c0_8 = arith.constant 0 : index
    %14 = vector.load %arg2[%c0_7, %13, %c1, %c0_8] : memref<1x18x18x4xf32, #tpu.memory_space<vmem>>, vector<1x8x16x4xf32>
    %15 = vector.shape_cast %14 : vector<1x8x16x4xf32> to vector<8x16x4xf32>
    %16 = vector.shape_cast %15 : vector<8x16x4xf32> to vector<128x4xf32>
    %c1_9 = arith.constant 1 : index
    %c0_10 = arith.constant 0 : index
    %c0_11 = arith.constant 0 : index
    %17 = vector.load %arg3[%c1_9, %c0_10, %c0_11] : memref<9x4x128xf32, #tpu.memory_space<vmem>>, vector<1x4x128xf32>
    %18 = vector.shape_cast %17 : vector<1x4x128xf32> to vector<4x128xf32>
    %cst_12 = arith.constant dense<0.000000e+00> : vector<128x128xf32>
    %19 = tpu.matmul %16, %18, %cst_12 {dimension_numbers = #tpu.dot_dimension_numbers<[1], [0], [0], [1], [0, 0, 1, 1], [], []>} : vector<128x4xf32>, vector<4x128xf32>, vector<128x128xf32> -> vector<128x128xf32>
    %20 = arith.addf %11, %19 : vector<128x128xf32>
    %c0_i32_13 = arith.constant 0 : i32
    %21 = arith.addi %1, %c0_i32_13 : i32
    %c0_14 = arith.constant 0 : index
    %22 = arith.index_cast %21 : i32 to index
    %c2 = arith.constant 2 : index
    %c0_15 = arith.constant 0 : index
    %23 = vector.load %arg2[%c0_14, %22, %c2, %c0_15] : memref<1x18x18x4xf32, #tpu.memory_space<vmem>>, vector<1x8x16x4xf32>
    %24 = vector.shape_cast %23 : vector<1x8x16x4xf32> to vector<8x16x4xf32>
    %25 = vector.shape_cast %24 : vector<8x16x4xf32> to vector<128x4xf32>
    %c2_16 = arith.constant 2 : index
    %c0_17 = arith.constant 0 : index
    %c0_18 = arith.constant 0 : index
    %26 = vector.load %arg3[%c2_16, %c0_17, %c0_18] : memref<9x4x128xf32, #tpu.memory_space<vmem>>, vector<1x4x128xf32>
    %27 = vector.shape_cast %26 : vector<1x4x128xf32> to vector<4x128xf32>
    %cst_19 = arith.constant dense<0.000000e+00> : vector<128x128xf32>
    %28 = tpu.matmul %25, %27, %cst_19 {dimension_numbers = #tpu.dot_dimension_numbers<[1], [0], [0], [1], [0, 0, 1, 1], [], []>} : vector<128x4xf32>, vector<4x128xf32>, vector<128x128xf32> -> vector<128x128xf32>
    %29 = arith.addf %20, %28 : vector<128x128xf32>
    %c1_i32 = arith.constant 1 : i32
    %30 = arith.addi %1, %c1_i32 : i32
    %c0_20 = arith.constant 0 : index
    %31 = arith.index_cast %30 : i32 to index
    %c0_21 = arith.constant 0 : index
    %c0_22 = arith.constant 0 : index
    %32 = vector.load %arg2[%c0_20, %31, %c0_21, %c0_22] : memref<1x18x18x4xf32, #tpu.memory_space<vmem>>, vector<1x8x16x4xf32>
    %33 = vector.shape_cast %32 : vector<1x8x16x4xf32> to vector<8x16x4xf32>
    %34 = vector.shape_cast %33 : vector<8x16x4xf32> to vector<128x4xf32>
    %c3 = arith.constant 3 : index
    %c0_23 = arith.constant 0 : index
    %c0_24 = arith.constant 0 : index
    %35 = vector.load %arg3[%c3, %c0_23, %c0_24] : memref<9x4x128xf32, #tpu.memory_space<vmem>>, vector<1x4x128xf32>
    %36 = vector.shape_cast %35 : vector<1x4x128xf32> to vector<4x128xf32>
    %cst_25 = arith.constant dense<0.000000e+00> : vector<128x128xf32>
    %37 = tpu.matmul %34, %36, %cst_25 {dimension_numbers = #tpu.dot_dimension_numbers<[1], [0], [0], [1], [0, 0, 1, 1], [], []>} : vector<128x4xf32>, vector<4x128xf32>, vector<128x128xf32> -> vector<128x128xf32>
    %38 = arith.addf %29, %37 : vector<128x128xf32>
    %c1_i32_26 = arith.constant 1 : i32
    %39 = arith.addi %1, %c1_i32_26 : i32
    %c0_27 = arith.constant 0 : index
    %40 = arith.index_cast %39 : i32 to index
    %c1_28 = arith.constant 1 : index
    %c0_29 = arith.constant 0 : index
    %41 = vector.load %arg2[%c0_27, %40, %c1_28, %c0_29] : memref<1x18x18x4xf32, #tpu.memory_space<vmem>>, vector<1x8x16x4xf32>
    %42 = vector.shape_cast %41 : vector<1x8x16x4xf32> to vector<8x16x4xf32>
    %43 = vector.shape_cast %42 : vector<8x16x4xf32> to vector<128x4xf32>
    %c4 = arith.constant 4 : index
    %c0_30 = arith.constant 0 : index
    %c0_31 = arith.constant 0 : index
    %44 = vector.load %arg3[%c4, %c0_30, %c0_31] : memref<9x4x128xf32, #tpu.memory_space<vmem>>, vector<1x4x128xf32>
    %45 = vector.shape_cast %44 : vector<1x4x128xf32> to vector<4x128xf32>
    %cst_32 = arith.constant dense<0.000000e+00> : vector<128x128xf32>
    %46 = tpu.matmul %43, %45, %cst_32 {dimension_numbers = #tpu.dot_dimension_numbers<[1], [0], [0], [1], [0, 0, 1, 1], [], []>} : vector<128x4xf32>, vector<4x128xf32>, vector<128x128xf32> -> vector<128x128xf32>
    %47 = arith.addf %38, %46 : vector<128x128xf32>
    %c1_i32_33 = arith.constant 1 : i32
    %48 = arith.addi %1, %c1_i32_33 : i32
    %c0_34 = arith.constant 0 : index
    %49 = arith.index_cast %48 : i32 to index
    %c2_35 = arith.constant 2 : index
    %c0_36 = arith.constant 0 : index
    %50 = vector.load %arg2[%c0_34, %49, %c2_35, %c0_36] : memref<1x18x18x4xf32, #tpu.memory_space<vmem>>, vector<1x8x16x4xf32>
    %51 = vector.shape_cast %50 : vector<1x8x16x4xf32> to vector<8x16x4xf32>
    %52 = vector.shape_cast %51 : vector<8x16x4xf32> to vector<128x4xf32>
    %c5 = arith.constant 5 : index
    %c0_37 = arith.constant 0 : index
    %c0_38 = arith.constant 0 : index
    %53 = vector.load %arg3[%c5, %c0_37, %c0_38] : memref<9x4x128xf32, #tpu.memory_space<vmem>>, vector<1x4x128xf32>
    %54 = vector.shape_cast %53 : vector<1x4x128xf32> to vector<4x128xf32>
    %cst_39 = arith.constant dense<0.000000e+00> : vector<128x128xf32>
    %55 = tpu.matmul %52, %54, %cst_39 {dimension_numbers = #tpu.dot_dimension_numbers<[1], [0], [0], [1], [0, 0, 1, 1], [], []>} : vector<128x4xf32>, vector<4x128xf32>, vector<128x128xf32> -> vector<128x128xf32>
    %56 = arith.addf %47, %55 : vector<128x128xf32>
    %c2_i32 = arith.constant 2 : i32
    %57 = arith.addi %1, %c2_i32 : i32
    %c0_40 = arith.constant 0 : index
    %58 = arith.index_cast %57 : i32 to index
    %c0_41 = arith.constant 0 : index
    %c0_42 = arith.constant 0 : index
    %59 = vector.load %arg2[%c0_40, %58, %c0_41, %c0_42] : memref<1x18x18x4xf32, #tpu.memory_space<vmem>>, vector<1x8x16x4xf32>
    %60 = vector.shape_cast %59 : vector<1x8x16x4xf32> to vector<8x16x4xf32>
    %61 = vector.shape_cast %60 : vector<8x16x4xf32> to vector<128x4xf32>
    %c6 = arith.constant 6 : index
    %c0_43 = arith.constant 0 : index
    %c0_44 = arith.constant 0 : index
    %62 = vector.load %arg3[%c6, %c0_43, %c0_44] : memref<9x4x128xf32, #tpu.memory_space<vmem>>, vector<1x4x128xf32>
    %63 = vector.shape_cast %62 : vector<1x4x128xf32> to vector<4x128xf32>
    %cst_45 = arith.constant dense<0.000000e+00> : vector<128x128xf32>
    %64 = tpu.matmul %61, %63, %cst_45 {dimension_numbers = #tpu.dot_dimension_numbers<[1], [0], [0], [1], [0, 0, 1, 1], [], []>} : vector<128x4xf32>, vector<4x128xf32>, vector<128x128xf32> -> vector<128x128xf32>
    %65 = arith.addf %56, %64 : vector<128x128xf32>
    %c2_i32_46 = arith.constant 2 : i32
    %66 = arith.addi %1, %c2_i32_46 : i32
    %c0_47 = arith.constant 0 : index
    %67 = arith.index_cast %66 : i32 to index
    %c1_48 = arith.constant 1 : index
    %c0_49 = arith.constant 0 : index
    %68 = vector.load %arg2[%c0_47, %67, %c1_48, %c0_49] : memref<1x18x18x4xf32, #tpu.memory_space<vmem>>, vector<1x8x16x4xf32>
    %69 = vector.shape_cast %68 : vector<1x8x16x4xf32> to vector<8x16x4xf32>
    %70 = vector.shape_cast %69 : vector<8x16x4xf32> to vector<128x4xf32>
    %c7 = arith.constant 7 : index
    %c0_50 = arith.constant 0 : index
    %c0_51 = arith.constant 0 : index
    %71 = vector.load %arg3[%c7, %c0_50, %c0_51] : memref<9x4x128xf32, #tpu.memory_space<vmem>>, vector<1x4x128xf32>
    %72 = vector.shape_cast %71 : vector<1x4x128xf32> to vector<4x128xf32>
    %cst_52 = arith.constant dense<0.000000e+00> : vector<128x128xf32>
    %73 = tpu.matmul %70, %72, %cst_52 {dimension_numbers = #tpu.dot_dimension_numbers<[1], [0], [0], [1], [0, 0, 1, 1], [], []>} : vector<128x4xf32>, vector<4x128xf32>, vector<128x128xf32> -> vector<128x128xf32>
    %74 = arith.addf %65, %73 : vector<128x128xf32>
    %c2_i32_53 = arith.constant 2 : i32
    %75 = arith.addi %1, %c2_i32_53 : i32
    %c0_54 = arith.constant 0 : index
    %76 = arith.index_cast %75 : i32 to index
    %c2_55 = arith.constant 2 : index
    %c0_56 = arith.constant 0 : index
    %77 = vector.load %arg2[%c0_54, %76, %c2_55, %c0_56] : memref<1x18x18x4xf32, #tpu.memory_space<vmem>>, vector<1x8x16x4xf32>
    %78 = vector.shape_cast %77 : vector<1x8x16x4xf32> to vector<8x16x4xf32>
    %79 = vector.shape_cast %78 : vector<8x16x4xf32> to vector<128x4xf32>
    %c8 = arith.constant 8 : index
    %c0_57 = arith.constant 0 : index
    %c0_58 = arith.constant 0 : index
    %80 = vector.load %arg3[%c8, %c0_57, %c0_58] : memref<9x4x128xf32, #tpu.memory_space<vmem>>, vector<1x4x128xf32>
    %81 = vector.shape_cast %80 : vector<1x4x128xf32> to vector<4x128xf32>
    %cst_59 = arith.constant dense<0.000000e+00> : vector<128x128xf32>
    %82 = tpu.matmul %79, %81, %cst_59 {dimension_numbers = #tpu.dot_dimension_numbers<[1], [0], [0], [1], [0, 0, 1, 1], [], []>} : vector<128x4xf32>, vector<4x128xf32>, vector<128x128xf32> -> vector<128x128xf32>
    %83 = arith.addf %74, %82 : vector<128x128xf32>
    %c0_60 = arith.constant 0 : index
    %c0_61 = arith.constant 0 : index
    %84 = vector.load %arg4[%c0_60, %c0_61] : memref<1x128xf32, #tpu.memory_space<vmem>>, vector<1x128xf32>
    %85 = vector.broadcast %84 : vector<1x128xf32> to vector<128x128xf32>
    %86 = arith.mulf %83, %85 : vector<128x128xf32>
    %c0_62 = arith.constant 0 : index
    %c0_63 = arith.constant 0 : index
    %87 = vector.load %arg5[%c0_62, %c0_63] : memref<1x128xf32, #tpu.memory_space<vmem>>, vector<1x128xf32>
    %88 = vector.broadcast %87 : vector<1x128xf32> to vector<128x128xf32>
    %89 = arith.addf %86, %88 : vector<128x128xf32>
    %cst_64 = arith.constant 0.000000e+00 : f32
    %90 = vector.broadcast %cst_64 : f32 to vector<128x128xf32>
    %91 = arith.maximumf %89, %90 : vector<128x128xf32>
    %92 = vector.shape_cast %91 : vector<128x128xf32> to vector<8x16x128xf32>
    %c0_65 = arith.constant 0 : index
    %c0_66 = arith.constant 0 : index
    %c0_67 = arith.constant 0 : index
    %c0_68 = arith.constant 0 : index
    %93 = vector.load %arg6[%c0_65, %c0_66, %c0_67, %c0_68] : memref<1x8x16x128xf32, #tpu.memory_space<vmem>>, vector<1x8x16x128xf32>
    %94 = vector.shape_cast %93 : vector<1x8x16x128xf32> to vector<8x16x128xf32>
    %95 = vector.shape_cast %92 : vector<8x16x128xf32> to vector<1x8x16x128xf32>
    tpu.vector_store %arg6[%c0_65, %c0_66, %c0_67, %c0_68], %95 {strides = array<i32>} : memref<1x8x16x128xf32, #tpu.memory_space<vmem>>, vector<1x8x16x128xf32>,
    return
  }
  func.func @transform_0(%arg0: i32, %arg1: i32) -> (i32, i32, i32, i32) {
    %c0_i32 = arith.constant 0 : i32
    %c0_i32_0 = arith.constant 0 : i32
    %c0_i32_1 = arith.constant 0 : i32
    %c0_i32_2 = arith.constant 0 : i32
    return %arg0, %c0_i32, %c0_i32_0, %c0_i32_1 : i32, i32, i32, i32
  }
  func.func @transform_1(%arg0: i32, %arg1: i32) -> (i32, i32, i32) {
    %c0_i32 = arith.constant 0 : i32
    %c0_i32_0 = arith.constant 0 : i32
    %c0_i32_1 = arith.constant 0 : i32
    %c0_i32_2 = arith.constant 0 : i32
    return %c0_i32, %c0_i32_0, %c0_i32_1 : i32, i32, i32
  }
  func.func @transform_2(%arg0: i32, %arg1: i32) -> (i32, i32) {
    %c0_i32 = arith.constant 0 : i32
    %c0_i32_0 = arith.constant 0 : i32
    %c0_i32_1 = arith.constant 0 : i32
    return %c0_i32, %c0_i32_0 : i32, i32
  }
  func.func @transform_3(%arg0: i32, %arg1: i32) -> (i32, i32) {
    %c0_i32 = arith.constant 0 : i32
    %c0_i32_0 = arith.constant 0 : i32
    %c0_i32_1 = arith.constant 0 : i32
    return %c0_i32, %c0_i32_0 : i32, i32
  }
  func.func @transform_4(%arg0: i32, %arg1: i32) -> (i32, i32, i32, i32) {
    %c0_i32 = arith.constant 0 : i32
    %c0_i32_0 = arith.constant 0 : i32
    %c0_i32_1 = arith.constant 0 : i32
    return %arg0, %arg1, %c0_i32, %c0_i32_0 : i32, i32, i32, i32
  }
}

</mosaic_0001>

<llo_original>
// kernel: tpu_custom_call.1
$region0: #{tpu_custom_call.1}
  #allocation0 [shape = 'u32[]', space=smem, size = 0x4, offset = 0x4, fixed_abs, tag = 'smem constant byte address 0x4 - core index']
  #allocation1 [shape = 'u32[144,128]{1,0:T(1,128)}', space=vmem, size = 0x12000, scoped, tag = 'internal scratch']
  %s0 = inlined_call_operand.vmem [shape: f32[2,18,18,4], index: 0, kind: input, shape index: {}]
  %s1 = inlined_call_operand.vmem [shape: f32[9,4,128], index: 1, kind: input, shape index: {}]
  %s2 = inlined_call_operand.vmem [shape: f32[1,128], index: 2, kind: input, shape index: {}]
  %s3 = inlined_call_operand.vmem [shape: f32[1,128], index: 3, kind: input, shape index: {}]
  %s4 = inlined_call_operand.hbm [shape: f32[2,16,16,128], index: 4, kind: output, shape index: {}]
  %s5 = sld [smem:[#allocation0]]
  $region49: #{tpu_custom_call.1} parent=0
    _
  %s7 = ssub.s32 1, %s5
  %s8 = scalar_select 0, %s7, %s5
  $region1: #{tpu_custom_call.1} parent=0
    #allocation2 [shape = 'u8[131072]{0}', space=vmem, size = 0x20000, scoped, tag = 'output window, operand 0']
    #allocation3 [shape = 's32[2]{0}', space=sflag, size = 0x8, scoped, tag = 'scoped memory for tpu_custom_call.1']
    %9 = vsyncpa [#allocation3], 0
    %s10 = scalar_lea.sflag [#allocation3], 1
    %11 = vsyncpa %s10, 0
    loop: start=0, step=1, limit=6
    $region2: #{tpu_custom_call.1} parent=1 // loop_pre_header
      _
    $region3: #{tpu_custom_call.1} parent=1 // loop_header
      %s13 = sphi 0, %s17
      %p14 = scmp.ge.s32.totalorder %s13, 6
      %s20 = sphi 0, %s32
      %s21 = sphi 0, %s28
      %s22 = sphi 0, %s20
      %s23 = sphi 0, %s21
      %s24 = sphi 0, %s22
      %s25 = sphi 0, %s23
      %s35 = sphi 0, %s37
      %s38 = sphi 0, %s35
      %s39 = sphi 0, %s38
      %s55 = sphi 0, %s39
      %s59 = sphi 0, %s59
      %s61 = sphi 0, %s59
      %s62 = sphi 0, %s61
      %s76 = sphi 0, %s62
      %s80 = sphi 0, %s80
      %s82 = sphi 0, %s80
      %s83 = sphi 0, %s82
      %s97 = sphi 0, %s83
      %s101 = sphi 0, %s101
      %s103 = sphi 0, %s101
      %s104 = sphi 0, %s103
      %s118 = sphi 0, %s104
      %s126 = sphi 0, %s128
      %s129 = sphi 0, %s126
      %s130 = sphi 0, %s129
      %s146 = sphi 0, %s130
    $region4: #{tpu_custom_call.1} parent=1 // loop_header_branch
      %16 = sbr.rel (%p14) target = $region8
    $region5: #{tpu_custom_call.1} parent=1 // loop_body
      %s18 = ssub.s32 %s13, 1
      %s19 = ssub.s32 %s13, 2
      %s26 = sadd.s32 1, %s21
      %p27 = scmp.ge.s32.totalorder %s26, 2
      %s28 = scalar_select %p27, 0, %s26
      %s29 = sadd.s32 1, %s20
      %s30 = scalar_select %p27, %s29, %s20
      %p31 = scmp.ge.s32.totalorder %s30, 2
      %s32 = scalar_select %p31, 0, %s30
      %s33 = ssub.s32 %s20, %s32
      %p34 = scmp.eq.s32.totalorder %s33, 0
      %s36 = sadd.s32 %s35, 1
      %s37 = scalar_select %p34, %s35, %s36
      %p40 = pneg %p34
      %p41 = scmp.eq.s32.totalorder %s13, 3
      %p42 = por %p40, %p41
      %p43 = scmp.ne.s32.totalorder %s35, %s38
      %p44 = scmp.eq.s32.totalorder %s13, 0
      %p45 = por %p43, %p44
      %p46 = scmp.ne.s32.totalorder %s35, %s38
      %p47 = scmp.eq.s32.totalorder %s18, 3
      %p48 = por %p46, %p47
      %p49 = scmp.ne.s32.totalorder %s38, %s39
      %p50 = scmp.eq.s32.totalorder %s18, 0
      %p51 = por %p49, %p50
      %p52 = scmp.ne.s32.totalorder %s38, %s39
      %p53 = scmp.eq.s32.totalorder %s19, 3
      %p54 = por %p52, %p53
      %p56 = scmp.ne.s32.totalorder %s39, %s55
      %p57 = scmp.eq.s32.totalorder %s19, 0
      %p58 = por %p56, %p57
      %s60 = sadd.s32 %s59, 1
      %p63 = scmp.eq.s32.totalorder %s13, 3
      %p64 = scmp.ne.s32.totalorder %s59, %s61
      %p65 = scmp.eq.s32.totalorder %s13, 0
      %p66 = por %p64, %p65
      %p67 = scmp.ne.s32.totalorder %s59, %s61
      %p68 = scmp.eq.s32.totalorder %s18, 3
      %p69 = por %p67, %p68
      %p70 = scmp.ne.s32.totalorder %s61, %s62
      %p71 = scmp.eq.s32.totalorder %s18, 0
      %p72 = por %p70, %p71
      %p73 = scmp.ne.s32.totalorder %s61, %s62
      %p74 = scmp.eq.s32.totalorder %s19, 3
      %p75 = por %p73, %p74
      %p77 = scmp.ne.s32.totalorder %s62, %s76
      %p78 = scmp.eq.s32.totalorder %s19, 0
      %p79 = por %p77, %p78
      %s81 = sadd.s32 %s80, 1
      %p84 = scmp.eq.s32.totalorder %s13, 3
      %p85 = scmp.ne.s32.totalorder %s80, %s82
      %p86 = scmp.eq.s32.totalorder %s13, 0
      %p87 = por %p85, %p86
      %p88 = scmp.ne.s32.totalorder %s80, %s82
      %p89 = scmp.eq.s32.totalorder %s18, 3
      %p90 = por %p88, %p89
      %p91 = scmp.ne.s32.totalorder %s82, %s83
      %p92 = scmp.eq.s32.totalorder %s18, 0
      %p93 = por %p91, %p92
      %p94 = scmp.ne.s32.totalorder %s82, %s83
      %p95 = scmp.eq.s32.totalorder %s19, 3
      %p96 = por %p94, %p95
      %p98 = scmp.ne.s32.totalorder %s83, %s97
      %p99 = scmp.eq.s32.totalorder %s19, 0
      %p100 = por %p98, %p99
      %s102 = sadd.s32 %s101, 1
      %p105 = scmp.eq.s32.totalorder %s13, 3
      %p106 = scmp.ne.s32.totalorder %s101, %s103
      %p107 = scmp.eq.s32.totalorder %s13, 0
      %p108 = por %p106, %p107
      %p109 = scmp.ne.s32.totalorder %s101, %s103
      %p110 = scmp.eq.s32.totalorder %s18, 3
      %p111 = por %p109, %p110
      %p112 = scmp.ne.s32.totalorder %s103, %s104
      %p113 = scmp.eq.s32.totalorder %s18, 0
      %p114 = por %p112, %p113
      %p115 = scmp.ne.s32.totalorder %s103, %s104
      %p116 = scmp.eq.s32.totalorder %s19, 3
      %p117 = por %p115, %p116
      %p119 = scmp.ne.s32.totalorder %s104, %s118
      %p120 = scmp.eq.s32.totalorder %s19, 0
      %p121 = por %p119, %p120
      %s122 = ssub.s32 %s20, %s32
      %s123 = ssub.s32 %s21, %s28
      %s124 = sor.u32 %s122, %s123
      %p125 = scmp.eq.s32.totalorder %s124, 0
      %s127 = sadd.s32 %s126, 1
      %s128 = scalar_select %p125, %s126, %s127
      %p131 = pneg %p125
      %p132 = scmp.eq.s32.totalorder %s13, 3
      %p133 = por %p131, %p132
      %p134 = scmp.ne.s32.totalorder %s126, %s129
      %p135 = scmp.eq.s32.totalorder %s13, 0
      %p136 = por %p134, %p135
      %p137 = scmp.ne.s32.totalorder %s126, %s129
      %p138 = scmp.eq.s32.totalorder %s18, 3
      %p139 = por %p137, %p138
      %p140 = scmp.ne.s32.totalorder %s129, %s130
      %p141 = scmp.eq.s32.totalorder %s18, 0
      %p142 = por %p140, %p141
      %p143 = scmp.ne.s32.totalorder %s129, %s130
      %p144 = scmp.eq.s32.totalorder %s19, 3
      %p145 = por %p143, %p144
      %p147 = scmp.ne.s32.totalorder %s130, %s146
      %p148 = scmp.eq.s32.totalorder %s19, 0
      %p149 = por %p147, %p148
      %p150 = scmp.le.s32.totalorder 1, %s13
      %p151 = scmp.lt.s32.totalorder %s13, 5
      %p152 = pnand %p150, %p151
      %p153 = pneg %p152
      // Predicated region
      $region9: #{tpu_custom_call.1} parent=5 // pred_check
        _
      $region10: #{tpu_custom_call.1} parent=5 // pred_check_branch
        %155 = sbr.rel (%p152) target = $region12
      $region11: #{tpu_custom_call.1} parent=5 // pred_region
        %s156 = ssub.s32 %s13, 1
        // Predicated region
        $region13: #{tpu_custom_call.1} parent=11 // pred_check
          %p157 = pneg %p72
        $region14: #{tpu_custom_call.1} parent=11 // pred_check_branch
          %159 = sbr.rel (%p157) target = $region16
        $region15: #{tpu_custom_call.1} parent=11 // pred_region
          _
        $region16: #{tpu_custom_call.1} parent=11 // pred_fallthru
          _
        // Predicated region
        $region17: #{tpu_custom_call.1} parent=11 // pred_check
          %p160 = pneg %p93
        $region18: #{tpu_custom_call.1} parent=11 // pred_check_branch
          %162 = sbr.rel (%p160) target = $region20
        $region19: #{tpu_custom_call.1} parent=11 // pred_region
          _
        $region20: #{tpu_custom_call.1} parent=11 // pred_fallthru
          _
        // Predicated region
        $region21: #{tpu_custom_call.1} parent=11 // pred_check
          %p163 = pneg %p114
        $region22: #{tpu_custom_call.1} parent=11 // pred_check_branch
          %165 = sbr.rel (%p163) target = $region24
        $region23: #{tpu_custom_call.1} parent=11 // pred_region
          _
        $region24: #{tpu_custom_call.1} parent=11 // pred_fallthru
          _
      $region12: #{tpu_custom_call.1} parent=5 // pred_fallthru
        _
      %p166 = scmp.lt.s32.totalorder %s13, 4
      // Predicated region
      $region25: #{tpu_custom_call.1} parent=5 // pred_check
        %p167 = pneg %p166
      $region26: #{tpu_custom_call.1} parent=5 // pred_check_branch
        %169 = sbr.rel (%p167) target = $region28
      $region27: #{tpu_custom_call.1} parent=5 // pred_region
        // Predicated region
        $region29: #{tpu_custom_call.1} parent=27 // pred_check
          %p170 = pneg %p45
        $region30: #{tpu_custom_call.1} parent=27 // pred_check_branch
          %172 = sbr.rel (%p170) target = $region32
        $region31: #{tpu_custom_call.1} parent=27 // pred_region
          %p173 = scmp.lt.s32.totalorder %s20, 1
          %s174 = scalar_select %p173, %s20, 1
          %s175 = smul.addr %s174, 54
          %s176 = smul.addr %s175, 8
          %s177 = scalar_lea.vmem %s0, %s176
        $region32: #{tpu_custom_call.1} parent=27 // pred_fallthru
          _
      $region28: #{tpu_custom_call.1} parent=5 // pred_fallthru
        _
      %p178 = scmp.le.s32.totalorder 1, %s13
      %p179 = scmp.lt.s32.totalorder %s13, 5
      %p180 = pnand %p178, %p179
      %p181 = pneg %p180
      // Predicated region
      $region33: #{tpu_custom_call.1} parent=5 // pred_check
        _
      $region34: #{tpu_custom_call.1} parent=5 // pred_check_branch
        %183 = sbr.rel (%p180) target = $region36
      $region35: #{tpu_custom_call.1} parent=5 // pred_region
        %s184 = ssub.s32 %s13, 1
        %p185 = scmp.lt.s32.totalorder %s22, 1
        %s186 = scalar_select %p185, %s22, 1
        %s187 = smul.addr %s186, 54
        %s188 = smul.addr %s187, 8
        %s189 = scalar_lea.vmem %s0, %s188
        %p190 = pneg %p51
        %p191 = pneg %p48
        %p192 = pneg %p72
        %p193 = pneg %p69
        %p194 = pneg %p93
        %p195 = pneg %p90
        %p196 = pneg %p114
        %p197 = pneg %p111
        %p198 = pneg %p142
        %p199 = pneg %p139
        %s200 = sand.u32 %s129, 1
        %s201 = scalar_lea.sflag [#allocation3], %s200
        %s202 = sand.u32 %s129, 1
        %s203 = smul.addr %s202, 128
        %s204 = scalar_lea.vmem [#allocation2], %s203
        %p205 = scmp.lt.s32.totalorder %s22, 1
        %s206 = scalar_select %p205, %s22, 1
        %s207 = smul.addr %s206, 54
        %s208 = smul.addr %s207, 8
        %s209 = scalar_lea.vmem %s0, %s208
        %s210 = smul.u32 8, %s23
        %s211 = smul.u32 %s23, 8
        %s212 = smul.u32 %s211, 24
        %s213 = scalar_lea.vmem %s209, %s212
        %v214 = vld [vmem:[%s213] sm:$0xff]
        %v215 = vld [vmem:[%s213 + $0x8] sm:$0xff]
        %v216 = vld [vmem:[%s213 + $0x18] sm:$0xff]
        %v217 = vld [vmem:[%s213 + $0x20] sm:$0xff]
        %v218 = vld [vmem:[%s213 + $0x30] sm:$0xff]
        %v219 = vld [vmem:[%s213 + $0x38] sm:$0xff]
        %v220 = vld [vmem:[%s213 + $0x48] sm:$0xff]
        %v221 = vld [vmem:[%s213 + $0x50] sm:$0xff]
        %v222 = vld [vmem:[%s213 + $0x60] sm:$0xff]
        %v223 = vld [vmem:[%s213 + $0x68] sm:$0xff]
        %v224 = vld [vmem:[%s213 + $0x78] sm:$0xff]
        %v225 = vld [vmem:[%s213 + $0x80] sm:$0xff]
        %v226 = vld [vmem:[%s213 + $0x90] sm:$0xff]
        %v227 = vld [vmem:[%s213 + $0x98] sm:$0xff]
        %v228 = vld [vmem:[%s213 + $0xa8] sm:$0xff]
        %v229 = vld [vmem:[%s213 + $0xb0] sm:$0xff]
        %v230 = vld [vmem:[%s1] sm:$0xf]
        %v231 = vld [vmem:[%s213 + $0x1] sm:$0xff]
        %v232 = vld [vmem:[%s213 + $0x9] sm:$0xff]
        %v233 = vld [vmem:[%s213 + $0x19] sm:$0xff]
        %v234 = vld [vmem:[%s213 + $0x21] sm:$0xff]
        %v235 = vld [vmem:[%s213 + $0x31] sm:$0xff]
        %v236 = vld [vmem:[%s213 + $0x39] sm:$0xff]
        %v237 = vld [vmem:[%s213 + $0x49] sm:$0xff]
        %v238 = vld [vmem:[%s213 + $0x51] sm:$0xff]
        %v239 = vld [vmem:[%s213 + $0x61] sm:$0xff]
        %v240 = vld [vmem:[%s213 + $0x69] sm:$0xff]
        %v241 = vld [vmem:[%s213 + $0x79] sm:$0xff]
        %v242 = vld [vmem:[%s213 + $0x81] sm:$0xff]
        %v243 = vld [vmem:[%s213 + $0x91] sm:$0xff]
        %v244 = vld [vmem:[%s213 + $0x99] sm:$0xff]
        %v245 = vld [vmem:[%s213 + $0xa9] sm:$0xff]
        %v246 = vld [vmem:[%s213 + $0xb1] sm:$0xff]
        %s247 = scalar_lea.vmem %s1, 4
        %v248 = vld [vmem:[%s247] sm:$0xf]
        %vm249 = vcmask 31744
        %v251 = vsel %vm249, %v231, 0
        %v254 = vsel %vm249, %v232, 0
        %v257 = vsel %vm249, %v233, 0
        %v260 = vsel %vm249, %v234, 0
        %v263 = vsel %vm249, %v235, 0
        %v266 = vsel %vm249, %v236, 0
        %v269 = vsel %vm249, %v237, 0
        %v272 = vsel %vm249, %v238, 0
        %v275 = vsel %vm249, %v239, 0
        %v278 = vsel %vm249, %v240, 0
        %v281 = vsel %vm249, %v241, 0
        %v284 = vsel %vm249, %v242, 0
        %v287 = vsel %vm249, %v243, 0
        %v290 = vsel %vm249, %v244, 0
        %v293 = vsel %vm249, %v245, 0
        %v296 = vsel %vm249, %v246, 0
        %vm298 = vcmask 1043456
        %v300 = vsel %vm298, %v248, 0
        %302 = vmatprep.subr.mxu0 0.0
        %303 = vmatpush1.msra.mxu0 %v300
        %304 = vmatprep.subr.mxu0 0.0
        %305 = vmatpush1.msra.mxu0 0.0
        %306 = vmatprep.subr.mxu0 0.0
        %307 = vmatpush1.msra.mxu0 0.0
        %308 = vmatprep.subr.mxu0 0.0
        %309 = vmatpush1.msra.mxu0 0.0
        %310 = vmatprep.subr.mxu0 0.0
        %311 = vmatpush1.msra.mxu0 0.0
        %312 = vmatprep.subr.mxu0 0.0
        %313 = vmatpush1.msra.mxu0 0.0
        %314 = vmatprep.subr.mxu0 0.0
        %315 = vmatpush1.msra.mxu0 0.0
        %316 = vmatprep.subr.mxu0 0.0
        %317 = vmatpush1.msra.mxu0 0.0
        %318 = vmatprep.subr.mxu0 0.0
        %319 = vmatpush1.msra.mxu0 0.0
        %320 = vmatprep.subr.mxu0 0.0
        %321 = vmatpush1.msra.mxu0 0.0
        %322 = vmatprep.subr.mxu0 0.0
        %323 = vmatpush1.msra.mxu0 0.0
        %324 = vmatprep.subr.mxu0 0.0
        %325 = vmatpush1.msra.mxu0 0.0
        %326 = vmatprep.subr.mxu0 0.0
        %327 = vmatpush1.msra.mxu0 0.0
        %328 = vmatprep.subr.mxu0 0.0
        %329 = vmatpush1.msra.mxu0 0.0
        %330 = vmatprep.subr.mxu0 0.0
        %331 = vmatpush1.msra.mxu0 0.0
        %332 = vmatprep.subr.mxu0 0.0
        %333 = vmatpush1.msra.mxu0 0.0
        %334 = vmatprep.subr.mxu0 0.0
        %335 = vmatpush1.msra.mxu0 0.0
        %336 = vmatprep.subr.mxu0 0.0
        %337 = vmatpush1.msra.mxu0 0.0
        %338 = vmatprep.subr.mxu0 0.0
        %339 = vmatpush1.msra.mxu0 0.0
        %340 = vmatprep.subr.mxu0 0.0
        %341 = vmatpush1.msra.mxu0 0.0
        %342 = vmatprep.subr.mxu0 0.0
        %343 = vmatpush1.msra.mxu0 0.0
        %344 = vmatprep.subr.mxu0 0.0
        %345 = vmatpush1.msra.mxu0 0.0
        %346 = vmatprep.subr.mxu0 0.0
        %347 = vmatpush1.msra.mxu0 0.0
        %348 = vmatprep.subr.mxu0 0.0
        %349 = vmatpush1.msra.mxu0 0.0
        %350 = vmatprep.subr.mxu0 0.0
        %351 = vmatpush1.msra.mxu0 0.0
        %352 = vmatprep.subr.mxu0 0.0
        %353 = vmatpush1.msra.mxu0 0.0
        %354 = vmatprep.subr.mxu0 0.0
        %355 = vmatpush1.msra.mxu0 0.0
        %356 = vmatprep.subr.mxu0 0.0
        %357 = vmatpush1.msra.mxu0 0.0
        %358 = vmatprep.subr.mxu0 0.0
        %359 = vmatpush1.msra.mxu0 0.0
        %360 = vmatprep.subr.mxu0 0.0
        %361 = vmatpush1.msra.mxu0 0.0
        %362 = vmatprep.subr.mxu0 0.0
        %363 = vmatpush1.msra.mxu0 0.0
        %364 = vmatprep.subr.mxu0 0.0
        %365 = vmatpush1.msra.mxu0 0.0
        %366 = vmatprep.mubr.f32.mxu0 0.0
        %367 = vmatmul.mubr.f32.gmra.mrb[0].mxu0 %v251
        %v368 = vpop.f32.mrb[0].mxu0
        %v369 = vadd.f32 0.0, %v368
        %v370 = vpop.f32.mrb[0].mxu0
        %371 = vmatprep.mubr.f32.mxu0 0.0
        %372 = vmatmul.mubr.f32.gmra.mrb[0].mxu0 %v254
        %v373 = vpop.f32.mrb[0].mxu0
        %v374 = vadd.f32 0.0, %v373
        %v375 = vpop.f32.mrb[0].mxu0
        %376 = vmatprep.mubr.f32.mxu0 0.0
        %377 = vmatmul.mubr.f32.gmra.mrb[0].mxu0 %v257
        %v378 = vpop.f32.mrb[0].mxu0
        %v379 = vadd.f32 0.0, %v378
        %v380 = vpop.f32.mrb[0].mxu0
        %381 = vmatprep.mubr.f32.mxu0 0.0
        %382 = vmatmul.mubr.f32.gmra.mrb[0].mxu0 %v260
        %v383 = vpop.f32.mrb[0].mxu0
        %v384 = vadd.f32 0.0, %v383
        %v385 = vpop.f32.mrb[0].mxu0
        %386 = vmatprep.mubr.f32.mxu0 0.0
        %387 = vmatmul.mubr.f32.gmra.mrb[0].mxu0 %v263
        %v388 = vpop.f32.mrb[0].mxu0
        %v389 = vadd.f32 0.0, %v388
        %v390 = vpop.f32.mrb[0].mxu0
        %391 = vmatprep.mubr.f32.mxu0 0.0
        %392 = vmatmul.mubr.f32.gmra.mrb[0].mxu0 %v266
        %v393 = vpop.f32.mrb[0].mxu0
        %v394 = vadd.f32 0.0, %v393
        %v395 = vpop.f32.mrb[0].mxu0
        %396 = vmatprep.mubr.f32.mxu0 0.0
        %397 = vmatmul.mubr.f32.gmra.mrb[0].mxu0 %v269
        %v398 = vpop.f32.mrb[0].mxu0
        %v399 = vadd.f32 0.0, %v398
        %v400 = vpop.f32.mrb[0].mxu0
        %401 = vmatprep.mubr.f32.mxu0 0.0
        %402 = vmatmul.mubr.f32.gmra.mrb[0].mxu0 %v272
        %v403 = vpop.f32.mrb[0].mxu0
        %v404 = vadd.f32 0.0, %v403
        %v405 = vpop.f32.mrb[0].mxu0
        %406 = vmatprep.mubr.f32.mxu0 0.0
        %407 = vmatmul.mubr.f32.gmra.mrb[0].mxu0 %v275
        %v408 = vpop.f32.mrb[0].mxu0
        %v409 = vadd.f32 0.0, %v408
        %v410 = vpop.f32.mrb[0].mxu0
        %411 = vmatprep.mubr.f32.mxu0 0.0
        %412 = vmatmul.mubr.f32.gmra.mrb[0].mxu0 %v278
        %v413 = vpop.f32.mrb[0].mxu0
        %v414 = vadd.f32 0.0, %v413
        %v415 = vpop.f32.mrb[0].mxu0
        %416 = vmatprep.mubr.f32.mxu0 0.0
        %417 = vmatmul.mubr.f32.gmra.mrb[0].mxu0 %v281
        %v418 = vpop.f32.mrb[0].mxu0
        %v419 = vadd.f32 0.0, %v418
        %v420 = vpop.f32.mrb[0].mxu0
        %421 = vmatprep.mubr.f32.mxu0 0.0
        %422 = vmatmul.mubr.f32.gmra.mrb[0].mxu0 %v284
        %v423 = vpop.f32.mrb[0].mxu0
        %v424 = vadd.f32 0.0, %v423
        %v425 = vpop.f32.mrb[0].mxu0
        %426 = vmatprep.mubr.f32.mxu0 0.0
        %427 = vmatmul.mubr.f32.gmra.mrb[0].mxu0 %v287
        %v428 = vpop.f32.mrb[0].mxu0
        %v429 = vadd.f32 0.0, %v428
        %v430 = vpop.f32.mrb[0].mxu0
        %431 = vmatprep.mubr.f32.mxu0 0.0
        %432 = vmatmul.mubr.f32.gmra.mrb[0].mxu0 %v290
        %v433 = vpop.f32.mrb[0].mxu0
        %v434 = vadd.f32 0.0, %v433
        %v435 = vpop.f32.mrb[0].mxu0
        %436 = vmatprep.mubr.f32.mxu0 0.0
        %437 = vmatmul.mubr.f32.gmra.mrb[0].mxu0 %v293
        %v438 = vpop.f32.mrb[0].mxu0
        %v439 = vadd.f32 0.0, %v438
        %v440 = vpop.f32.mrb[0].mxu0
        %441 = vmatprep.mubr.f32.mxu0 0.0
        %442 = vmatmul.mubr.f32.gmra.mrb[0].mxu0 %v296
        %v443 = vpop.f32.mrb[0].mxu0
        %v444 = vadd.f32 0.0, %v443
        %v445 = vpop.f32.mrb[0].mxu0
        %446 = vdwg.mxu0
        %v448 = vsel %vm249, %v214, 0
        %v451 = vsel %vm249, %v215, 0
        %v454 = vsel %vm249, %v216, 0
        %v457 = vsel %vm249, %v217, 0
        %v460 = vsel %vm249, %v218, 0
        %v463 = vsel %vm249, %v219, 0
        %v466 = vsel %vm249, %v220, 0
        %v469 = vsel %vm249, %v221, 0
        %v472 = vsel %vm249, %v222, 0
        %v475 = vsel %vm249, %v223, 0
        %v478 = vsel %vm249, %v224, 0
        %v481 = vsel %vm249, %v225, 0
        %v484 = vsel %vm249, %v226, 0
        %v487 = vsel %vm249, %v227, 0
        %v490 = vsel %vm249, %v228, 0
        %v493 = vsel %vm249, %v229, 0
        %v496 = vsel %vm298, %v230, 0
        %498 = vmatprep.subr.mxu0 0.0
        %499 = vmatpush1.msra.mxu0 %v496
        %500 = vmatprep.subr.mxu0 0.0
        %501 = vmatpush1.msra.mxu0 0.0
        %502 = vmatprep.subr.mxu0 0.0
        %503 = vmatpush1.msra.mxu0 0.0
        %504 = vmatprep.subr.mxu0 0.0
        %505 = vmatpush1.msra.mxu0 0.0
        %506 = vmatprep.subr.mxu0 0.0
        %507 = vmatpush1.msra.mxu0 0.0
        %508 = vmatprep.subr.mxu0 0.0
        %509 = vmatpush1.msra.mxu0 0.0
        %510 = vmatprep.subr.mxu0 0.0
        %511 = vmatpush1.msra.mxu0 0.0
        %512 = vmatprep.subr.mxu0 0.0
        %513 = vmatpush1.msra.mxu0 0.0
        %514 = vmatprep.subr.mxu0 0.0
        %515 = vmatpush1.msra.mxu0 0.0
        %516 = vmatprep.subr.mxu0 0.0
        %517 = vmatpush1.msra.mxu0 0.0
        %518 = vmatprep.subr.mxu0 0.0
        %519 = vmatpush1.msra.mxu0 0.0
        %520 = vmatprep.subr.mxu0 0.0
        %521 = vmatpush1.msra.mxu0 0.0
        %522 = vmatprep.subr.mxu0 0.0
        %523 = vmatpush1.msra.mxu0 0.0
        %524 = vmatprep.subr.mxu0 0.0
        %525 = vmatpush1.msra.mxu0 0.0
        %526 = vmatprep.subr.mxu0 0.0
        %527 = vmatpush1.msra.mxu0 0.0
        %528 = vmatprep.subr.mxu0 0.0
        %529 = vmatpush1.msra.mxu0 0.0
        %530 = vmatprep.subr.mxu0 0.0
        %531 = vmatpush1.msra.mxu0 0.0
        %532 = vmatprep.subr.mxu0 0.0
        %533 = vmatpush1.msra.mxu0 0.0
        %534 = vmatprep.subr.mxu0 0.0
        %535 = vmatpush1.msra.mxu0 0.0
        %536 = vmatprep.subr.mxu0 0.0
        %537 = vmatpush1.msra.mxu0 0.0
        %538 = vmatprep.subr.mxu0 0.0
        %539 = vmatpush1.msra.mxu0 0.0
        %540 = vmatprep.subr.mxu0 0.0
        %541 = vmatpush1.msra.mxu0 0.0
        %542 = vmatprep.subr.mxu0 0.0
        %543 = vmatpush1.msra.mxu0 0.0
        %544 = vmatprep.subr.mxu0 0.0
        %545 = vmatpush1.msra.mxu0 0.0
        %546 = vmatprep.subr.mxu0 0.0
        %547 = vmatpush1.msra.mxu0 0.0
        %548 = vmatprep.subr.mxu0 0.0
        %549 = vmatpush1.msra.mxu0 0.0
        %550 = vmatprep.subr.mxu0 0.0
        %551 = vmatpush1.msra.mxu0 0.0
        %552 = vmatprep.subr.mxu0 0.0
        %553 = vmatpush1.msra.mxu0 0.0
        %554 = vmatprep.subr.mxu0 0.0
        %555 = vmatpush1.msra.mxu0 0.0
        %556 = vmatprep.subr.mxu0 0.0
        %557 = vmatpush1.msra.mxu0 0.0
        %558 = vmatprep.subr.mxu0 0.0
        %559 = vmatpush1.msra.mxu0 0.0
        %560 = vmatprep.subr.mxu0 0.0
        %561 = vmatpush1.msra.mxu0 0.0
        %562 = vmatprep.mubr.f32.mxu0 0.0
        %563 = vmatmul.mubr.f32.gmra.mrb[0].mxu0 %v448
        %v564 = vpop.f32.mrb[0].mxu0
        %v565 = vadd.f32 %v369, %v564
        %v566 = vpop.f32.mrb[0].mxu0
        %567 = vmatprep.mubr.f32.mxu0 0.0
        %568 = vmatmul.mubr.f32.gmra.mrb[0].mxu0 %v451
        %v569 = vpop.f32.mrb[0].mxu0
        %v570 = vadd.f32 %v374, %v569
        %v571 = vpop.f32.mrb[0].mxu0
        %572 = vmatprep.mubr.f32.mxu0 0.0
        %573 = vmatmul.mubr.f32.gmra.mrb[0].mxu0 %v454
        %v574 = vpop.f32.mrb[0].mxu0
        %v575 = vadd.f32 %v379, %v574
        %v576 = vpop.f32.mrb[0].mxu0
        %577 = vmatprep.mubr.f32.mxu0 0.0
        %578 = vmatmul.mubr.f32.gmra.mrb[0].mxu0 %v457
        %v579 = vpop.f32.mrb[0].mxu0
        %v580 = vadd.f32 %v384, %v579
        %v581 = vpop.f32.mrb[0].mxu0
        %582 = vmatprep.mubr.f32.mxu0 0.0
        %583 = vmatmul.mubr.f32.gmra.mrb[0].mxu0 %v460
        %v584 = vpop.f32.mrb[0].mxu0
        %v585 = vadd.f32 %v389, %v584
        %v586 = vpop.f32.mrb[0].mxu0
        %587 = vmatprep.mubr.f32.mxu0 0.0
        %588 = vmatmul.mubr.f32.gmra.mrb[0].mxu0 %v463
        %v589 = vpop.f32.mrb[0].mxu0
        %v590 = vadd.f32 %v394, %v589
        %v591 = vpop.f32.mrb[0].mxu0
        %592 = vmatprep.mubr.f32.mxu0 0.0
        %593 = vmatmul.mubr.f32.gmra.mrb[0].mxu0 %v466
        %v594 = vpop.f32.mrb[0].mxu0
        %v595 = vadd.f32 %v399, %v594
        %v596 = vpop.f32.mrb[0].mxu0
        %597 = vmatprep.mubr.f32.mxu0 0.0
        %598 = vmatmul.mubr.f32.gmra.mrb[0].mxu0 %v469
        %v599 = vpop.f32.mrb[0].mxu0
        %v600 = vadd.f32 %v404, %v599
        %v601 = vpop.f32.mrb[0].mxu0
        %602 = vmatprep.mubr.f32.mxu0 0.0
        %603 = vmatmul.mubr.f32.gmra.mrb[0].mxu0 %v472
        %v604 = vpop.f32.mrb[0].mxu0
        %v605 = vadd.f32 %v409, %v604
        %v606 = vpop.f32.mrb[0].mxu0
        %607 = vmatprep.mubr.f32.mxu0 0.0
        %608 = vmatmul.mubr.f32.gmra.mrb[0].mxu0 %v475
        %v609 = vpop.f32.mrb[0].mxu0
        %v610 = vadd.f32 %v414, %v609
        %v611 = vpop.f32.mrb[0].mxu0
        %612 = vmatprep.mubr.f32.mxu0 0.0
        %613 = vmatmul.mubr.f32.gmra.mrb[0].mxu0 %v478
        %v614 = vpop.f32.mrb[0].mxu0
        %v615 = vadd.f32 %v419, %v614
        %v616 = vpop.f32.mrb[0].mxu0
        %617 = vmatprep.mubr.f32.mxu0 0.0
        %618 = vmatmul.mubr.f32.gmra.mrb[0].mxu0 %v481
        %v619 = vpop.f32.mrb[0].mxu0
        %v620 = vadd.f32 %v424, %v619
        %v621 = vpop.f32.mrb[0].mxu0
        %622 = vmatprep.mubr.f32.mxu0 0.0
        %623 = vmatmul.mubr.f32.gmra.mrb[0].mxu0 %v484
        %v624 = vpop.f32.mrb[0].mxu0
        %v625 = vadd.f32 %v429, %v624
        %v626 = vpop.f32.mrb[0].mxu0
        %627 = vmatprep.mubr.f32.mxu0 0.0
        %628 = vmatmul.mubr.f32.gmra.mrb[0].mxu0 %v487
        %v629 = vpop.f32.mrb[0].mxu0
        %v630 = vadd.f32 %v434, %v629
        %v631 = vpop.f32.mrb[0].mxu0
        %632 = vmatprep.mubr.f32.mxu0 0.0
        %633 = vmatmul.mubr.f32.gmra.mrb[0].mxu0 %v490
        %v634 = vpop.f32.mrb[0].mxu0
        %v635 = vadd.f32 %v439, %v634
        %v636 = vpop.f32.mrb[0].mxu0
        %637 = vmatprep.mubr.f32.mxu0 0.0
        %638 = vmatmul.mubr.f32.gmra.mrb[0].mxu0 %v493
        %v639 = vpop.f32.mrb[0].mxu0
        %v640 = vadd.f32 %v444, %v639
        %v641 = vpop.f32.mrb[0].mxu0
        %642 = vdwg.mxu0
        %v643 = vld [vmem:[%s213 + $0x2] sm:$0xff]
        %v644 = vld [vmem:[%s213 + $0xa] sm:$0xff]
        %v645 = vld [vmem:[%s213 + $0x1a] sm:$0xff]
        %v646 = vld [vmem:[%s213 + $0x22] sm:$0xff]
        %v647 = vld [vmem:[%s213 + $0x32] sm:$0xff]
        %v648 = vld [vmem:[%s213 + $0x3a] sm:$0xff]
        %v649 = vld [vmem:[%s213 + $0x4a] sm:$0xff]
        %v650 = vld [vmem:[%s213 + $0x52] sm:$0xff]
        %v651 = vld [vmem:[%s213 + $0x62] sm:$0xff]
        %v652 = vld [vmem:[%s213 + $0x6a] sm:$0xff]
        %v653 = vld [vmem:[%s213 + $0x7a] sm:$0xff]
        %v654 = vld [vmem:[%s213 + $0x82] sm:$0xff]
        %v655 = vld [vmem:[%s213 + $0x92] sm:$0xff]
        %v656 = vld [vmem:[%s213 + $0x9a] sm:$0xff]
        %v657 = vld [vmem:[%s213 + $0xaa] sm:$0xff]
        %v658 = vld [vmem:[%s213 + $0xb2] sm:$0xff]
        %s659 = scalar_lea.vmem %s1, 8
        %v660 = vld [vmem:[%s659] sm:$0xf]
        %v662 = vsel %vm249, %v643, 0
        %v665 = vsel %vm249, %v644, 0
        %v668 = vsel %vm249, %v645, 0
        %v671 = vsel %vm249, %v646, 0
        %v674 = vsel %vm249, %v647, 0
        %v677 = vsel %vm249, %v648, 0
        %v680 = vsel %vm249, %v649, 0
        %v683 = vsel %vm249, %v650, 0
        %v686 = vsel %vm249, %v651, 0
        %v689 = vsel %vm249, %v652, 0
        %v692 = vsel %vm249, %v653, 0
        %v695 = vsel %vm249, %v654, 0
        %v698 = vsel %vm249, %v655, 0
        %v701 = vsel %vm249, %v656, 0
        %v704 = vsel %vm249, %v657, 0
        %v707 = vsel %vm249, %v658, 0
        %v710 = vsel %vm298, %v660, 0
        %712 = vmatprep.subr.mxu0 0.0
        %713 = vmatpush1.msra.mxu0 %v710
        %714 = vmatprep.subr.mxu0 0.0
        %715 = vmatpush1.msra.mxu0 0.0
        %716 = vmatprep.subr.mxu0 0.0
        %717 = vmatpush1.msra.mxu0 0.0
        %718 = vmatprep.subr.mxu0 0.0
        %719 = vmatpush1.msra.mxu0 0.0
        %720 = vmatprep.subr.mxu0 0.0
        %721 = vmatpush1.msra.mxu0 0.0
        %722 = vmatprep.subr.mxu0 0.0
        %723 = vmatpush1.msra.mxu0 0.0
        %724 = vmatprep.subr.mxu0 0.0
        %725 = vmatpush1.msra.mxu0 0.0
        %726 = vmatprep.subr.mxu0 0.0
        %727 = vmatpush1.msra.mxu0 0.0
        %728 = vmatprep.subr.mxu0 0.0
        %729 = vmatpush1.msra.mxu0 0.0
        %730 = vmatprep.subr.mxu0 0.0
        %731 = vmatpush1.msra.mxu0 0.0
        %732 = vmatprep.subr.mxu0 0.0
        %733 = vmatpush1.msra.mxu0 0.0
        %734 = vmatprep.subr.mxu0 0.0
        %735 = vmatpush1.msra.mxu0 0.0
        %736 = vmatprep.subr.mxu0 0.0
        %737 = vmatpush1.msra.mxu0 0.0
        %738 = vmatprep.subr.mxu0 0.0
        %739 = vmatpush1.msra.mxu0 0.0
        %740 = vmatprep.subr.mxu0 0.0
        %741 = vmatpush1.msra.mxu0 0.0
        %742 = vmatprep.subr.mxu0 0.0
        %743 = vmatpush1.msra.mxu0 0.0
        %744 = vmatprep.subr.mxu0 0.0
        %745 = vmatpush1.msra.mxu0 0.0
        %746 = vmatprep.subr.mxu0 0.0
        %747 = vmatpush1.msra.mxu0 0.0
        %748 = vmatprep.subr.mxu0 0.0
        %749 = vmatpush1.msra.mxu0 0.0
        %750 = vmatprep.subr.mxu0 0.0
        %751 = vmatpush1.msra.mxu0 0.0
        %752 = vmatprep.subr.mxu0 0.0
        %753 = vmatpush1.msra.mxu0 0.0
        %754 = vmatprep.subr.mxu0 0.0
        %755 = vmatpush1.msra.mxu0 0.0
        %756 = vmatprep.subr.mxu0 0.0
        %757 = vmatpush1.msra.mxu0 0.0
        %758 = vmatprep.subr.mxu0 0.0
        %759 = vmatpush1.msra.mxu0 0.0
        %760 = vmatprep.subr.mxu0 0.0
        %761 = vmatpush1.msra.mxu0 0.0
        %762 = vmatprep.subr.mxu0 0.0
        %763 = vmatpush1.msra.mxu0 0.0
        %764 = vmatprep.subr.mxu0 0.0
        %765 = vmatpush1.msra.mxu0 0.0
        %766 = vmatprep.subr.mxu0 0.0
        %767 = vmatpush1.msra.mxu0 0.0
        %768 = vmatprep.subr.mxu0 0.0
        %769 = vmatpush1.msra.mxu0 0.0
        %770 = vmatprep.subr.mxu0 0.0
        %771 = vmatpush1.msra.mxu0 0.0
        %772 = vmatprep.subr.mxu0 0.0
        %773 = vmatpush1.msra.mxu0 0.0
        %774 = vmatprep.subr.mxu0 0.0
        %775 = vmatpush1.msra.mxu0 0.0
        %776 = vmatprep.mubr.f32.mxu0 0.0
        %777 = vmatmul.mubr.f32.gmra.mrb[0].mxu0 %v662
        %v778 = vpop.f32.mrb[0].mxu0
        %v779 = vadd.f32 0.0, %v778
        %v780 = vpop.f32.mrb[0].mxu0
        %781 = vmatprep.mubr.f32.mxu0 0.0
        %782 = vmatmul.mubr.f32.gmra.mrb[0].mxu0 %v665
        %v783 = vpop.f32.mrb[0].mxu0
        %v784 = vadd.f32 0.0, %v783
        %v785 = vpop.f32.mrb[0].mxu0
        %786 = vmatprep.mubr.f32.mxu0 0.0
        %787 = vmatmul.mubr.f32.gmra.mrb[0].mxu0 %v668
        %v788 = vpop.f32.mrb[0].mxu0
        %v789 = vadd.f32 0.0, %v788
        %v790 = vpop.f32.mrb[0].mxu0
        %791 = vmatprep.mubr.f32.mxu0 0.0
        %792 = vmatmul.mubr.f32.gmra.mrb[0].mxu0 %v671
        %v793 = vpop.f32.mrb[0].mxu0
        %v794 = vadd.f32 0.0, %v793
        %v795 = vpop.f32.mrb[0].mxu0
        %796 = vmatprep.mubr.f32.mxu0 0.0
        %797 = vmatmul.mubr.f32.gmra.mrb[0].mxu0 %v674
        %v798 = vpop.f32.mrb[0].mxu0
        %v799 = vadd.f32 0.0, %v798
        %v800 = vpop.f32.mrb[0].mxu0
        %801 = vmatprep.mubr.f32.mxu0 0.0
        %802 = vmatmul.mubr.f32.gmra.mrb[0].mxu0 %v677
        %v803 = vpop.f32.mrb[0].mxu0
        %v804 = vadd.f32 0.0, %v803
        %v805 = vpop.f32.mrb[0].mxu0
        %806 = vmatprep.mubr.f32.mxu0 0.0
        %807 = vmatmul.mubr.f32.gmra.mrb[0].mxu0 %v680
        %v808 = vpop.f32.mrb[0].mxu0
        %v809 = vadd.f32 0.0, %v808
        %v810 = vpop.f32.mrb[0].mxu0
        %811 = vmatprep.mubr.f32.mxu0 0.0
        %812 = vmatmul.mubr.f32.gmra.mrb[0].mxu0 %v683
        %v813 = vpop.f32.mrb[0].mxu0
        %v814 = vadd.f32 0.0, %v813
        %v815 = vpop.f32.mrb[0].mxu0
        %816 = vmatprep.mubr.f32.mxu0 0.0
        %817 = vmatmul.mubr.f32.gmra.mrb[0].mxu0 %v686
        %v818 = vpop.f32.mrb[0].mxu0
        %v819 = vadd.f32 0.0, %v818
        %v820 = vpop.f32.mrb[0].mxu0
        %821 = vmatprep.mubr.f32.mxu0 0.0
        %822 = vmatmul.mubr.f32.gmra.mrb[0].mxu0 %v689
        %v823 = vpop.f32.mrb[0].mxu0
        %v824 = vadd.f32 0.0, %v823
        %v825 = vpop.f32.mrb[0].mxu0
        %826 = vmatprep.mubr.f32.mxu0 0.0
        %827 = vmatmul.mubr.f32.gmra.mrb[0].mxu0 %v692
        %v828 = vpop.f32.mrb[0].mxu0
        %v829 = vadd.f32 0.0, %v828
        %v830 = vpop.f32.mrb[0].mxu0
        %831 = vmatprep.mubr.f32.mxu0 0.0
        %832 = vmatmul.mubr.f32.gmra.mrb[0].mxu0 %v695
        %v833 = vpop.f32.mrb[0].mxu0
        %v834 = vadd.f32 0.0, %v833
        %v835 = vpop.f32.mrb[0].mxu0
        %836 = vmatprep.mubr.f32.mxu0 0.0
        %837 = vmatmul.mubr.f32.gmra.mrb[0].mxu0 %v698
        %v838 = vpop.f32.mrb[0].mxu0
        %v839 = vadd.f32 0.0, %v838
        %v840 = vpop.f32.mrb[0].mxu0
        %841 = vmatprep.mubr.f32.mxu0 0.0
        %842 = vmatmul.mubr.f32.gmra.mrb[0].mxu0 %v701
        %v843 = vpop.f32.mrb[0].mxu0
        %v844 = vadd.f32 0.0, %v843
        %v845 = vpop.f32.mrb[0].mxu0
        %846 = vmatprep.mubr.f32.mxu0 0.0
        %847 = vmatmul.mubr.f32.gmra.mrb[0].mxu0 %v704
        %v848 = vpop.f32.mrb[0].mxu0
        %v849 = vadd.f32 0.0, %v848
        %v850 = vpop.f32.mrb[0].mxu0
        %851 = vmatprep.mubr.f32.mxu0 0.0
        %852 = vmatmul.mubr.f32.gmra.mrb[0].mxu0 %v707
        %v853 = vpop.f32.mrb[0].mxu0
        %v854 = vadd.f32 0.0, %v853
        %v855 = vpop.f32.mrb[0].mxu0
        %856 = vdwg.mxu0
        %v857 = vadd.f32 %v565, %v779
        %v858 = vadd.f32 %v570, %v784
        %v859 = vadd.f32 %v575, %v789
        %v860 = vadd.f32 %v580, %v794
        %v861 = vadd.f32 %v585, %v799
        %v862 = vadd.f32 %v590, %v804
        %v863 = vadd.f32 %v595, %v809
        %v864 = vadd.f32 %v600, %v814
        %v865 = vadd.f32 %v605, %v819
        %v866 = vadd.f32 %v610, %v824
        %v867 = vadd.f32 %v615, %v829
        %v868 = vadd.f32 %v620, %v834
        %v869 = vadd.f32 %v625, %v839
        %v870 = vadd.f32 %v630, %v844
        %v871 = vadd.f32 %v635, %v849
        %v872 = vadd.f32 %v640, %v854
        %s873 = sadd.s32 %s211, 1
        %s874 = smul.u32 %s873, 24
        %s875 = scalar_lea.vmem %s209, %s874
        %v876 = vld [vmem:[%s875] sm:$0xff]
        %v877 = vld [vmem:[%s875 + $0x8] sm:$0xff]
        %v878 = vld [vmem:[%s875 + $0x18] sm:$0xff]
        %v879 = vld [vmem:[%s875 + $0x20] sm:$0xff]
        %v880 = vld [vmem:[%s875 + $0x30] sm:$0xff]
        %v881 = vld [vmem:[%s875 + $0x38] sm:$0xff]
        %v882 = vld [vmem:[%s875 + $0x48] sm:$0xff]
        %v883 = vld [vmem:[%s875 + $0x50] sm:$0xff]
        %v884 = vld [vmem:[%s875 + $0x60] sm:$0xff]
        %v885 = vld [vmem:[%s875 + $0x68] sm:$0xff]
        %v886 = vld [vmem:[%s875 + $0x78] sm:$0xff]
        %v887 = vld [vmem:[%s875 + $0x80] sm:$0xff]
        %v888 = vld [vmem:[%s875 + $0x90] sm:$0xff]
        %v889 = vld [vmem:[%s875 + $0x98] sm:$0xff]
        %v890 = vld [vmem:[%s875 + $0xa8] sm:$0xff]
        %v891 = vld [vmem:[%s875 + $0xb0] sm:$0xff]
        %s892 = scalar_lea.vmem %s1, 12
        %v893 = vld [vmem:[%s892] sm:$0xf]
        %v895 = vsel %vm249, %v876, 0
        %v898 = vsel %vm249, %v877, 0
        %v901 = vsel %vm249, %v878, 0
        %v904 = vsel %vm249, %v879, 0
        %v907 = vsel %vm249, %v880, 0
        %v910 = vsel %vm249, %v881, 0
        %v913 = vsel %vm249, %v882, 0
        %v916 = vsel %vm249, %v883, 0
        %v919 = vsel %vm249, %v884, 0
        %v922 = vsel %vm249, %v885, 0
        %v925 = vsel %vm249, %v886, 0
        %v928 = vsel %vm249, %v887, 0
        %v931 = vsel %vm249, %v888, 0
        %v934 = vsel %vm249, %v889, 0
        %v937 = vsel %vm249, %v890, 0
        %v940 = vsel %vm249, %v891, 0
        %v943 = vsel %vm298, %v893, 0
        %945 = vmatprep.subr.mxu0 0.0
        %946 = vmatpush1.msra.mxu0 %v943
        %947 = vmatprep.subr.mxu0 0.0
        %948 = vmatpush1.msra.mxu0 0.0
        %949 = vmatprep.subr.mxu0 0.0
        %950 = vmatpush1.msra.mxu0 0.0
        %951 = vmatprep.subr.mxu0 0.0
        %952 = vmatpush1.msra.mxu0 0.0
        %953 = vmatprep.subr.mxu0 0.0
        %954 = vmatpush1.msra.mxu0 0.0
        %955 = vmatprep.subr.mxu0 0.0
        %956 = vmatpush1.msra.mxu0 0.0
        %957 = vmatprep.subr.mxu0 0.0
        %958 = vmatpush1.msra.mxu0 0.0
        %959 = vmatprep.subr.mxu0 0.0
        %960 = vmatpush1.msra.mxu0 0.0
        %961 = vmatprep.subr.mxu0 0.0
        %962 = vmatpush1.msra.mxu0 0.0
        %963 = vmatprep.subr.mxu0 0.0
        %964 = vmatpush1.msra.mxu0 0.0
        %965 = vmatprep.subr.mxu0 0.0
        %966 = vmatpush1.msra.mxu0 0.0
        %967 = vmatprep.subr.mxu0 0.0
        %968 = vmatpush1.msra.mxu0 0.0
        %969 = vmatprep.subr.mxu0 0.0
        %970 = vmatpush1.msra.mxu0 0.0
        %971 = vmatprep.subr.mxu0 0.0
        %972 = vmatpush1.msra.mxu0 0.0
        %973 = vmatprep.subr.mxu0 0.0
        %974 = vmatpush1.msra.mxu0 0.0
        %975 = vmatprep.subr.mxu0 0.0
        %976 = vmatpush1.msra.mxu0 0.0
        %977 = vmatprep.subr.mxu0 0.0
        %978 = vmatpush1.msra.mxu0 0.0
        %979 = vmatprep.subr.mxu0 0.0
        %980 = vmatpush1.msra.mxu0 0.0
        %981 = vmatprep.subr.mxu0 0.0
        %982 = vmatpush1.msra.mxu0 0.0
        %983 = vmatprep.subr.mxu0 0.0
        %984 = vmatpush1.msra.mxu0 0.0
        %985 = vmatprep.subr.mxu0 0.0
        %986 = vmatpush1.msra.mxu0 0.0
        %987 = vmatprep.subr.mxu0 0.0
        %988 = vmatpush1.msra.mxu0 0.0
        %989 = vmatprep.subr.mxu0 0.0
        %990 = vmatpush1.msra.mxu0 0.0
        %991 = vmatprep.subr.mxu0 0.0
        %992 = vmatpush1.msra.mxu0 0.0
        %993 = vmatprep.subr.mxu0 0.0
        %994 = vmatpush1.msra.mxu0 0.0
        %995 = vmatprep.subr.mxu0 0.0
        %996 = vmatpush1.msra.mxu0 0.0
        %997 = vmatprep.subr.mxu0 0.0
        %998 = vmatpush1.msra.mxu0 0.0
        %999 = vmatprep.subr.mxu0 0.0
        %1000 = vmatpush1.msra.mxu0 0.0
        %1001 = vmatprep.subr.mxu0 0.0
        %1002 = vmatpush1.msra.mxu0 0.0
        %1003 = vmatprep.subr.mxu0 0.0
        %1004 = vmatpush1.msra.mxu0 0.0
        %1005 = vmatprep.subr.mxu0 0.0
        %1006 = vmatpush1.msra.mxu0 0.0
        %1007 = vmatprep.subr.mxu0 0.0
        %1008 = vmatpush1.msra.mxu0 0.0
        %1009 = vmatprep.mubr.f32.mxu0 0.0
        %1010 = vmatmul.mubr.f32.gmra.mrb[0].mxu0 %v895
        %v1011 = vpop.f32.mrb[0].mxu0
        %v1012 = vadd.f32 0.0, %v1011
        %v1013 = vpop.f32.mrb[0].mxu0
        %1014 = vmatprep.mubr.f32.mxu0 0.0
        %1015 = vmatmul.mubr.f32.gmra.mrb[0].mxu0 %v898
        %v1016 = vpop.f32.mrb[0].mxu0
        %v1017 = vadd.f32 0.0, %v1016
        %v1018 = vpop.f32.mrb[0].mxu0
        %1019 = vmatprep.mubr.f32.mxu0 0.0
        %1020 = vmatmul.mubr.f32.gmra.mrb[0].mxu0 %v901
        %v1021 = vpop.f32.mrb[0].mxu0
        %v1022 = vadd.f32 0.0, %v1021
        %v1023 = vpop.f32.mrb[0].mxu0
        %1024 = vmatprep.mubr.f32.mxu0 0.0
        %1025 = vmatmul.mubr.f32.gmra.mrb[0].mxu0 %v904
        %v1026 = vpop.f32.mrb[0].mxu0
        %v1027 = vadd.f32 0.0, %v1026
        %v1028 = vpop.f32.mrb[0].mxu0
        %1029 = vmatprep.mubr.f32.mxu0 0.0
        %1030 = vmatmul.mubr.f32.gmra.mrb[0].mxu0 %v907
        %v1031 = vpop.f32.mrb[0].mxu0
        %v1032 = vadd.f32 0.0, %v1031
        %v1033 = vpop.f32.mrb[0].mxu0
        %1034 = vmatprep.mubr.f32.mxu0 0.0
        %1035 = vmatmul.mubr.f32.gmra.mrb[0].mxu0 %v910
        %v1036 = vpop.f32.mrb[0].mxu0
        %v1037 = vadd.f32 0.0, %v1036
        %v1038 = vpop.f32.mrb[0].mxu0
        %1039 = vmatprep.mubr.f32.mxu0 0.0
        %1040 = vmatmul.mubr.f32.gmra.mrb[0].mxu0 %v913
        %v1041 = vpop.f32.mrb[0].mxu0
        %v1042 = vadd.f32 0.0, %v1041
        %v1043 = vpop.f32.mrb[0].mxu0
        %1044 = vmatprep.mubr.f32.mxu0 0.0
        %1045 = vmatmul.mubr.f32.gmra.mrb[0].mxu0 %v916
        %v1046 = vpop.f32.mrb[0].mxu0
        %v1047 = vadd.f32 0.0, %v1046
        %v1048 = vpop.f32.mrb[0].mxu0
        %1049 = vmatprep.mubr.f32.mxu0 0.0
        %1050 = vmatmul.mubr.f32.gmra.mrb[0].mxu0 %v919
        %v1051 = vpop.f32.mrb[0].mxu0
        %v1052 = vadd.f32 0.0, %v1051
        %v1053 = vpop.f32.mrb[0].mxu0
        %1054 = vmatprep.mubr.f32.mxu0 0.0
        %1055 = vmatmul.mubr.f32.gmra.mrb[0].mxu0 %v922
        %v1056 = vpop.f32.mrb[0].mxu0
        %v1057 = vadd.f32 0.0, %v1056
        %v1058 = vpop.f32.mrb[0].mxu0
        %1059 = vmatprep.mubr.f32.mxu0 0.0
        %1060 = vmatmul.mubr.f32.gmra.mrb[0].mxu0 %v925
        %v1061 = vpop.f32.mrb[0].mxu0
        %v1062 = vadd.f32 0.0, %v1061
        %v1063 = vpop.f32.mrb[0].mxu0
        %1064 = vmatprep.mubr.f32.mxu0 0.0
        %1065 = vmatmul.mubr.f32.gmra.mrb[0].mxu0 %v928
        %v1066 = vpop.f32.mrb[0].mxu0
        %v1067 = vadd.f32 0.0, %v1066
        %v1068 = vpop.f32.mrb[0].mxu0
        %1069 = vmatprep.mubr.f32.mxu0 0.0
        %1070 = vmatmul.mubr.f32.gmra.mrb[0].mxu0 %v931
        %v1071 = vpop.f32.mrb[0].mxu0
        %v1072 = vadd.f32 0.0, %v1071
        %v1073 = vpop.f32.mrb[0].mxu0
        %1074 = vmatprep.mubr.f32.mxu0 0.0
        %1075 = vmatmul.mubr.f32.gmra.mrb[0].mxu0 %v934
        %v1076 = vpop.f32.mrb[0].mxu0
        %v1077 = vadd.f32 0.0, %v1076
        %v1078 = vpop.f32.mrb[0].mxu0
        %1079 = vmatprep.mubr.f32.mxu0 0.0
        %1080 = vmatmul.mubr.f32.gmra.mrb[0].mxu0 %v937
        %v1081 = vpop.f32.mrb[0].mxu0
        %v1082 = vadd.f32 0.0, %v1081
        %v1083 = vpop.f32.mrb[0].mxu0
        %1084 = vmatprep.mubr.f32.mxu0 0.0
        %1085 = vmatmul.mubr.f32.gmra.mrb[0].mxu0 %v940
        %v1086 = vpop.f32.mrb[0].mxu0
        %v1087 = vadd.f32 0.0, %v1086
        %v1088 = vpop.f32.mrb[0].mxu0
        %1089 = vdwg.mxu0
        %v1090 = vadd.f32 %v857, %v1012
        %v1091 = vadd.f32 %v858, %v1017
        %v1092 = vadd.f32 %v859, %v1022
        %v1093 = vadd.f32 %v860, %v1027
        %v1094 = vadd.f32 %v861, %v1032
        %v1095 = vadd.f32 %v862, %v1037
        %v1096 = vadd.f32 %v863, %v1042
        %v1097 = vadd.f32 %v864, %v1047
        %v1098 = vadd.f32 %v865, %v1052
        %v1099 = vadd.f32 %v866, %v1057
        %v1100 = vadd.f32 %v867, %v1062
        %v1101 = vadd.f32 %v868, %v1067
        %v1102 = vadd.f32 %v869, %v1072
        %v1103 = vadd.f32 %v870, %v1077
        %v1104 = vadd.f32 %v871, %v1082
        %v1105 = vadd.f32 %v872, %v1087
        %v1106 = vld [vmem:[%s875 + $0x1] sm:$0xff]
        %v1107 = vld [vmem:[%s875 + $0x9] sm:$0xff]
        %v1108 = vld [vmem:[%s875 + $0x19] sm:$0xff]
        %v1109 = vld [vmem:[%s875 + $0x21] sm:$0xff]
        %v1110 = vld [vmem:[%s875 + $0x31] sm:$0xff]
        %v1111 = vld [vmem:[%s875 + $0x39] sm:$0xff]
        %v1112 = vld [vmem:[%s875 + $0x49] sm:$0xff]
        %v1113 = vld [vmem:[%s875 + $0x51] sm:$0xff]
        %v1114 = vld [vmem:[%s875 + $0x61] sm:$0xff]
        %v1115 = vld [vmem:[%s875 + $0x69] sm:$0xff]
        %v1116 = vld [vmem:[%s875 + $0x79] sm:$0xff]
        %v1117 = vld [vmem:[%s875 + $0x81] sm:$0xff]
        %v1118 = vld [vmem:[%s875 + $0x91] sm:$0xff]
        %v1119 = vld [vmem:[%s875 + $0x99] sm:$0xff]
        %v1120 = vld [vmem:[%s875 + $0xa9] sm:$0xff]
        %v1121 = vld [vmem:[%s875 + $0xb1] sm:$0xff]
        %s1122 = scalar_lea.vmem %s1, 16
        %v1123 = vld [vmem:[%s1122] sm:$0xf]
        %v1125 = vsel %vm249, %v1106, 0
        %v1128 = vsel %vm249, %v1107, 0
        %v1131 = vsel %vm249, %v1108, 0
        %v1134 = vsel %vm249, %v1109, 0
        %v1137 = vsel %vm249, %v1110, 0
        %v1140 = vsel %vm249, %v1111, 0
        %v1143 = vsel %vm249, %v1112, 0
        %v1146 = vsel %vm249, %v1113, 0
        %v1149 = vsel %vm249, %v1114, 0
        %v1152 = vsel %vm249, %v1115, 0
        %v1155 = vsel %vm249, %v1116, 0
        %v1158 = vsel %vm249, %v1117, 0
        %v1161 = vsel %vm249, %v1118, 0
        %v1164 = vsel %vm249, %v1119, 0
        %v1167 = vsel %vm249, %v1120, 0
        %v1170 = vsel %vm249, %v1121, 0
        %v1173 = vsel %vm298, %v1123, 0
        %1175 = vmatprep.subr.mxu0 0.0
        %1176 = vmatpush1.msra.mxu0 %v1173
        %1177 = vmatprep.subr.mxu0 0.0
        %1178 = vmatpush1.msra.mxu0 0.0
        %1179 = vmatprep.subr.mxu0 0.0
        %1180 = vmatpush1.msra.mxu0 0.0
        %1181 = vmatprep.subr.mxu0 0.0
        %1182 = vmatpush1.msra.mxu0 0.0
        %1183 = vmatprep.subr.mxu0 0.0
        %1184 = vmatpush1.msra.mxu0 0.0
        %1185 = vmatprep.subr.mxu0 0.0
        %1186 = vmatpush1.msra.mxu0 0.0
        %1187 = vmatprep.subr.mxu0 0.0
        %1188 = vmatpush1.msra.mxu0 0.0
        %1189 = vmatprep.subr.mxu0 0.0
        %1190 = vmatpush1.msra.mxu0 0.0
        %1191 = vmatprep.subr.mxu0 0.0
        %1192 = vmatpush1.msra.mxu0 0.0
        %1193 = vmatprep.subr.mxu0 0.0
        %1194 = vmatpush1.msra.mxu0 0.0
        %1195 = vmatprep.subr.mxu0 0.0
        %1196 = vmatpush1.msra.mxu0 0.0
        %1197 = vmatprep.subr.mxu0 0.0
        %1198 = vmatpush1.msra.mxu0 0.0
        %1199 = vmatprep.subr.mxu0 0.0
        %1200 = vmatpush1.msra.mxu0 0.0
        %1201 = vmatprep.subr.mxu0 0.0
        %1202 = vmatpush1.msra.mxu0 0.0
        %1203 = vmatprep.subr.mxu0 0.0
        %1204 = vmatpush1.msra.mxu0 0.0
        %1205 = vmatprep.subr.mxu0 0.0
        %1206 = vmatpush1.msra.mxu0 0.0
        %1207 = vmatprep.subr.mxu0 0.0
        %1208 = vmatpush1.msra.mxu0 0.0
        %1209 = vmatprep.subr.mxu0 0.0
        %1210 = vmatpush1.msra.mxu0 0.0
        %1211 = vmatprep.subr.mxu0 0.0
        %1212 = vmatpush1.msra.mxu0 0.0
        %1213 = vmatprep.subr.mxu0 0.0
        %1214 = vmatpush1.msra.mxu0 0.0
        %1215 = vmatprep.subr.mxu0 0.0
        %1216 = vmatpush1.msra.mxu0 0.0
        %1217 = vmatprep.subr.mxu0 0.0
        %1218 = vmatpush1.msra.mxu0 0.0
        %1219 = vmatprep.subr.mxu0 0.0
        %1220 = vmatpush1.msra.mxu0 0.0
        %1221 = vmatprep.subr.mxu0 0.0
        %1222 = vmatpush1.msra.mxu0 0.0
        %1223 = vmatprep.subr.mxu0 0.0
        %1224 = vmatpush1.msra.mxu0 0.0
        %1225 = vmatprep.subr.mxu0 0.0
        %1226 = vmatpush1.msra.mxu0 0.0
        %1227 = vmatprep.subr.mxu0 0.0
        %1228 = vmatpush1.msra.mxu0 0.0
        %1229 = vmatprep.subr.mxu0 0.0
        %1230 = vmatpush1.msra.mxu0 0.0
        %1231 = vmatprep.subr.mxu0 0.0
        %1232 = vmatpush1.msra.mxu0 0.0
        %1233 = vmatprep.subr.mxu0 0.0
        %1234 = vmatpush1.msra.mxu0 0.0
        %1235 = vmatprep.subr.mxu0 0.0
        %1236 = vmatpush1.msra.mxu0 0.0
        %1237 = vmatprep.subr.mxu0 0.0
        %1238 = vmatpush1.msra.mxu0 0.0
        %1239 = vmatprep.mubr.f32.mxu0 0.0
        %1240 = vmatmul.mubr.f32.gmra.mrb[0].mxu0 %v1125
        %v1241 = vpop.f32.mrb[0].mxu0
        %v1242 = vadd.f32 0.0, %v1241
        %v1243 = vpop.f32.mrb[0].mxu0
        %1244 = vmatprep.mubr.f32.mxu0 0.0
        %1245 = vmatmul.mubr.f32.gmra.mrb[0].mxu0 %v1128
        %v1246 = vpop.f32.mrb[0].mxu0
        %v1247 = vadd.f32 0.0, %v1246
        %v1248 = vpop.f32.mrb[0].mxu0
        %1249 = vmatprep.mubr.f32.mxu0 0.0
        %1250 = vmatmul.mubr.f32.gmra.mrb[0].mxu0 %v1131
        %v1251 = vpop.f32.mrb[0].mxu0
        %v1252 = vadd.f32 0.0, %v1251
        %v1253 = vpop.f32.mrb[0].mxu0
        %1254 = vmatprep.mubr.f32.mxu0 0.0
        %1255 = vmatmul.mubr.f32.gmra.mrb[0].mxu0 %v1134
        %v1256 = vpop.f32.mrb[0].mxu0
        %v1257 = vadd.f32 0.0, %v1256
        %v1258 = vpop.f32.mrb[0].mxu0
        %1259 = vmatprep.mubr.f32.mxu0 0.0
        %1260 = vmatmul.mubr.f32.gmra.mrb[0].mxu0 %v1137
        %v1261 = vpop.f32.mrb[0].mxu0
        %v1262 = vadd.f32 0.0, %v1261
        %v1263 = vpop.f32.mrb[0].mxu0
        %1264 = vmatprep.mubr.f32.mxu0 0.0
        %1265 = vmatmul.mubr.f32.gmra.mrb[0].mxu0 %v1140
        %v1266 = vpop.f32.mrb[0].mxu0
        %v1267 = vadd.f32 0.0, %v1266
        %v1268 = vpop.f32.mrb[0].mxu0
        %1269 = vmatprep.mubr.f32.mxu0 0.0
        %1270 = vmatmul.mubr.f32.gmra.mrb[0].mxu0 %v1143
        %v1271 = vpop.f32.mrb[0].mxu0
        %v1272 = vadd.f32 0.0, %v1271
        %v1273 = vpop.f32.mrb[0].mxu0
        %1274 = vmatprep.mubr.f32.mxu0 0.0
        %1275 = vmatmul.mubr.f32.gmra.mrb[0].mxu0 %v1146
        %v1276 = vpop.f32.mrb[0].mxu0
        %v1277 = vadd.f32 0.0, %v1276
        %v1278 = vpop.f32.mrb[0].mxu0
        %1279 = vmatprep.mubr.f32.mxu0 0.0
        %1280 = vmatmul.mubr.f32.gmra.mrb[0].mxu0 %v1149
        %v1281 = vpop.f32.mrb[0].mxu0
        %v1282 = vadd.f32 0.0, %v1281
        %v1283 = vpop.f32.mrb[0].mxu0
        %1284 = vmatprep.mubr.f32.mxu0 0.0
        %1285 = vmatmul.mubr.f32.gmra.mrb[0].mxu0 %v1152
        %v1286 = vpop.f32.mrb[0].mxu0
        %v1287 = vadd.f32 0.0, %v1286
        %v1288 = vpop.f32.mrb[0].mxu0
        %1289 = vmatprep.mubr.f32.mxu0 0.0
        %1290 = vmatmul.mubr.f32.gmra.mrb[0].mxu0 %v1155
        %v1291 = vpop.f32.mrb[0].mxu0
        %v1292 = vadd.f32 0.0, %v1291
        %v1293 = vpop.f32.mrb[0].mxu0
        %1294 = vmatprep.mubr.f32.mxu0 0.0
        %1295 = vmatmul.mubr.f32.gmra.mrb[0].mxu0 %v1158
        %v1296 = vpop.f32.mrb[0].mxu0
        %v1297 = vadd.f32 0.0, %v1296
        %v1298 = vpop.f32.mrb[0].mxu0
        %1299 = vmatprep.mubr.f32.mxu0 0.0
        %1300 = vmatmul.mubr.f32.gmra.mrb[0].mxu0 %v1161
        %v1301 = vpop.f32.mrb[0].mxu0
        %v1302 = vadd.f32 0.0, %v1301
        %v1303 = vpop.f32.mrb[0].mxu0
        %1304 = vmatprep.mubr.f32.mxu0 0.0
        %1305 = vmatmul.mubr.f32.gmra.mrb[0].mxu0 %v1164
        %v1306 = vpop.f32.mrb[0].mxu0
        %v1307 = vadd.f32 0.0, %v1306
        %v1308 = vpop.f32.mrb[0].mxu0
        %1309 = vmatprep.mubr.f32.mxu0 0.0
        %1310 = vmatmul.mubr.f32.gmra.mrb[0].mxu0 %v1167
        %v1311 = vpop.f32.mrb[0].mxu0
        %v1312 = vadd.f32 0.0, %v1311
        %v1313 = vpop.f32.mrb[0].mxu0
        %1314 = vmatprep.mubr.f32.mxu0 0.0
        %1315 = vmatmul.mubr.f32.gmra.mrb[0].mxu0 %v1170
        %v1316 = vpop.f32.mrb[0].mxu0
        %v1317 = vadd.f32 0.0, %v1316
        %v1318 = vpop.f32.mrb[0].mxu0
        %1319 = vdwg.mxu0
        %v1320 = vadd.f32 %v1090, %v1242
        %v1321 = vadd.f32 %v1091, %v1247
        %v1322 = vadd.f32 %v1092, %v1252
        %v1323 = vadd.f32 %v1093, %v1257
        %v1324 = vadd.f32 %v1094, %v1262
        %v1325 = vadd.f32 %v1095, %v1267
        %v1326 = vadd.f32 %v1096, %v1272
        %v1327 = vadd.f32 %v1097, %v1277
        %v1328 = vadd.f32 %v1098, %v1282
        %v1329 = vadd.f32 %v1099, %v1287
        %v1330 = vadd.f32 %v1100, %v1292
        %v1331 = vadd.f32 %v1101, %v1297
        %v1332 = vadd.f32 %v1102, %v1302
        %v1333 = vadd.f32 %v1103, %v1307
        %v1334 = vadd.f32 %v1104, %v1312
        %v1335 = vadd.f32 %v1105, %v1317
        %v1336 = vld [vmem:[%s875 + $0x2] sm:$0xff]
        %v1337 = vld [vmem:[%s875 + $0xa] sm:$0xff]
        %v1338 = vld [vmem:[%s875 + $0x1a] sm:$0xff]
        %v1339 = vld [vmem:[%s875 + $0x22] sm:$0xff]
        %v1340 = vld [vmem:[%s875 + $0x32] sm:$0xff]
        %v1341 = vld [vmem:[%s875 + $0x3a] sm:$0xff]
        %v1342 = vld [vmem:[%s875 + $0x4a] sm:$0xff]
        %v1343 = vld [vmem:[%s875 + $0x52] sm:$0xff]
        %v1344 = vld [vmem:[%s875 + $0x62] sm:$0xff]
        %v1345 = vld [vmem:[%s875 + $0x6a] sm:$0xff]
        %v1346 = vld [vmem:[%s875 + $0x7a] sm:$0xff]
        %v1347 = vld [vmem:[%s875 + $0x82] sm:$0xff]
        %v1348 = vld [vmem:[%s875 + $0x92] sm:$0xff]
        %v1349 = vld [vmem:[%s875 + $0x9a] sm:$0xff]
        %v1350 = vld [vmem:[%s875 + $0xaa] sm:$0xff]
        %v1351 = vld [vmem:[%s875 + $0xb2] sm:$0xff]
        %s1352 = scalar_lea.vmem %s1, 20
        %v1353 = vld [vmem:[%s1352] sm:$0xf]
        %v1355 = vsel %vm249, %v1336, 0
        %v1358 = vsel %vm249, %v1337, 0
        %v1361 = vsel %vm249, %v1338, 0
        %v1364 = vsel %vm249, %v1339, 0
        %v1367 = vsel %vm249, %v1340, 0
        %v1370 = vsel %vm249, %v1341, 0
        %v1373 = vsel %vm249, %v1342, 0
        %v1376 = vsel %vm249, %v1343, 0
        %v1379 = vsel %vm249, %v1344, 0
        %v1382 = vsel %vm249, %v1345, 0
        %v1385 = vsel %vm249, %v1346, 0
        %v1388 = vsel %vm249, %v1347, 0
        %v1391 = vsel %vm249, %v1348, 0
        %v1394 = vsel %vm249, %v1349, 0
        %v1397 = vsel %vm249, %v1350, 0
        %v1400 = vsel %vm249, %v1351, 0
        %v1403 = vsel %vm298, %v1353, 0
        %1405 = vmatprep.subr.mxu0 0.0
        %1406 = vmatpush1.msra.mxu0 %v1403
        %1407 = vmatprep.subr.mxu0 0.0
        %1408 = vmatpush1.msra.mxu0 0.0
        %1409 = vmatprep.subr.mxu0 0.0
        %1410 = vmatpush1.msra.mxu0 0.0
        %1411 = vmatprep.subr.mxu0 0.0
        %1412 = vmatpush1.msra.mxu0 0.0
        %1413 = vmatprep.subr.mxu0 0.0
        %1414 = vmatpush1.msra.mxu0 0.0
        %1415 = vmatprep.subr.mxu0 0.0
        %1416 = vmatpush1.msra.mxu0 0.0
        %1417 = vmatprep.subr.mxu0 0.0
        %1418 = vmatpush1.msra.mxu0 0.0
        %1419 = vmatprep.subr.mxu0 0.0
        %1420 = vmatpush1.msra.mxu0 0.0
        %1421 = vmatprep.subr.mxu0 0.0
        %1422 = vmatpush1.msra.mxu0 0.0
        %1423 = vmatprep.subr.mxu0 0.0
        %1424 = vmatpush1.msra.mxu0 0.0
        %1425 = vmatprep.subr.mxu0 0.0
        %1426 = vmatpush1.msra.mxu0 0.0
        %1427 = vmatprep.subr.mxu0 0.0
        %1428 = vmatpush1.msra.mxu0 0.0
        %1429 = vmatprep.subr.mxu0 0.0
        %1430 = vmatpush1.msra.mxu0 0.0
        %1431 = vmatprep.subr.mxu0 0.0
        %1432 = vmatpush1.msra.mxu0 0.0
        %1433 = vmatprep.subr.mxu0 0.0
        %1434 = vmatpush1.msra.mxu0 0.0
        %1435 = vmatprep.subr.mxu0 0.0
        %1436 = vmatpush1.msra.mxu0 0.0
        %1437 = vmatprep.subr.mxu0 0.0
        %1438 = vmatpush1.msra.mxu0 0.0
        %1439 = vmatprep.subr.mxu0 0.0
        %1440 = vmatpush1.msra.mxu0 0.0
        %1441 = vmatprep.subr.mxu0 0.0
        %1442 = vmatpush1.msra.mxu0 0.0
        %1443 = vmatprep.subr.mxu0 0.0
        %1444 = vmatpush1.msra.mxu0 0.0
        %1445 = vmatprep.subr.mxu0 0.0
        %1446 = vmatpush1.msra.mxu0 0.0
        %1447 = vmatprep.subr.mxu0 0.0
        %1448 = vmatpush1.msra.mxu0 0.0
        %1449 = vmatprep.subr.mxu0 0.0
        %1450 = vmatpush1.msra.mxu0 0.0
        %1451 = vmatprep.subr.mxu0 0.0
        %1452 = vmatpush1.msra.mxu0 0.0
        %1453 = vmatprep.subr.mxu0 0.0
        %1454 = vmatpush1.msra.mxu0 0.0
        %1455 = vmatprep.subr.mxu0 0.0
        %1456 = vmatpush1.msra.mxu0 0.0
        %1457 = vmatprep.subr.mxu0 0.0
        %1458 = vmatpush1.msra.mxu0 0.0
        %1459 = vmatprep.subr.mxu0 0.0
        %1460 = vmatpush1.msra.mxu0 0.0
        %1461 = vmatprep.subr.mxu0 0.0
        %1462 = vmatpush1.msra.mxu0 0.0
        %1463 = vmatprep.subr.mxu0 0.0
        %1464 = vmatpush1.msra.mxu0 0.0
        %1465 = vmatprep.subr.mxu0 0.0
        %1466 = vmatpush1.msra.mxu0 0.0
        %1467 = vmatprep.subr.mxu0 0.0
        %1468 = vmatpush1.msra.mxu0 0.0
        %1469 = vmatprep.mubr.f32.mxu0 0.0
        %1470 = vmatmul.mubr.f32.gmra.mrb[0].mxu0 %v1355
        %v1471 = vpop.f32.mrb[0].mxu0
        %v1472 = vadd.f32 0.0, %v1471
        %v1473 = vpop.f32.mrb[0].mxu0
        %1474 = vmatprep.mubr.f32.mxu0 0.0
        %1475 = vmatmul.mubr.f32.gmra.mrb[0].mxu0 %v1358
        %v1476 = vpop.f32.mrb[0].mxu0
        %v1477 = vadd.f32 0.0, %v1476
        %v1478 = vpop.f32.mrb[0].mxu0
        %1479 = vmatprep.mubr.f32.mxu0 0.0
        %1480 = vmatmul.mubr.f32.gmra.mrb[0].mxu0 %v1361
        %v1481 = vpop.f32.mrb[0].mxu0
        %v1482 = vadd.f32 0.0, %v1481
        %v1483 = vpop.f32.mrb[0].mxu0
        %1484 = vmatprep.mubr.f32.mxu0 0.0
        %1485 = vmatmul.mubr.f32.gmra.mrb[0].mxu0 %v1364
        %v1486 = vpop.f32.mrb[0].mxu0
        %v1487 = vadd.f32 0.0, %v1486
        %v1488 = vpop.f32.mrb[0].mxu0
        %1489 = vmatprep.mubr.f32.mxu0 0.0
        %1490 = vmatmul.mubr.f32.gmra.mrb[0].mxu0 %v1367
        %v1491 = vpop.f32.mrb[0].mxu0
        %v1492 = vadd.f32 0.0, %v1491
        %v1493 = vpop.f32.mrb[0].mxu0
        %1494 = vmatprep.mubr.f32.mxu0 0.0
        %1495 = vmatmul.mubr.f32.gmra.mrb[0].mxu0 %v1370
        %v1496 = vpop.f32.mrb[0].mxu0
        %v1497 = vadd.f32 0.0, %v1496
        %v1498 = vpop.f32.mrb[0].mxu0
        %1499 = vmatprep.mubr.f32.mxu0 0.0
        %1500 = vmatmul.mubr.f32.gmra.mrb[0].mxu0 %v1373
        %v1501 = vpop.f32.mrb[0].mxu0
        %v1502 = vadd.f32 0.0, %v1501
        %v1503 = vpop.f32.mrb[0].mxu0
        %1504 = vmatprep.mubr.f32.mxu0 0.0
        %1505 = vmatmul.mubr.f32.gmra.mrb[0].mxu0 %v1376
        %v1506 = vpop.f32.mrb[0].mxu0
        %v1507 = vadd.f32 0.0, %v1506
        %v1508 = vpop.f32.mrb[0].mxu0
        %1509 = vmatprep.mubr.f32.mxu0 0.0
        %1510 = vmatmul.mubr.f32.gmra.mrb[0].mxu0 %v1379
        %v1511 = vpop.f32.mrb[0].mxu0
        %v1512 = vadd.f32 0.0, %v1511
        %v1513 = vpop.f32.mrb[0].mxu0
        %1514 = vmatprep.mubr.f32.mxu0 0.0
        %1515 = vmatmul.mubr.f32.gmra.mrb[0].mxu0 %v1382
        %v1516 = vpop.f32.mrb[0].mxu0
        %v1517 = vadd.f32 0.0, %v1516
        %v1518 = vpop.f32.mrb[0].mxu0
        %1519 = vmatprep.mubr.f32.mxu0 0.0
        %1520 = vmatmul.mubr.f32.gmra.mrb[0].mxu0 %v1385
        %v1521 = vpop.f32.mrb[0].mxu0
        %v1522 = vadd.f32 0.0, %v1521
        %v1523 = vpop.f32.mrb[0].mxu0
        %1524 = vmatprep.mubr.f32.mxu0 0.0
        %1525 = vmatmul.mubr.f32.gmra.mrb[0].mxu0 %v1388
        %v1526 = vpop.f32.mrb[0].mxu0
        %v1527 = vadd.f32 0.0, %v1526
        %v1528 = vpop.f32.mrb[0].mxu0
        %1529 = vmatprep.mubr.f32.mxu0 0.0
        %1530 = vmatmul.mubr.f32.gmra.mrb[0].mxu0 %v1391
        %v1531 = vpop.f32.mrb[0].mxu0
        %v1532 = vadd.f32 0.0, %v1531
        %v1533 = vpop.f32.mrb[0].mxu0
        %1534 = vmatprep.mubr.f32.mxu0 0.0
        %1535 = vmatmul.mubr.f32.gmra.mrb[0].mxu0 %v1394
        %v1536 = vpop.f32.mrb[0].mxu0
        %v1537 = vadd.f32 0.0, %v1536
        %v1538 = vpop.f32.mrb[0].mxu0
        %1539 = vmatprep.mubr.f32.mxu0 0.0
        %1540 = vmatmul.mubr.f32.gmra.mrb[0].mxu0 %v1397
        %v1541 = vpop.f32.mrb[0].mxu0
        %v1542 = vadd.f32 0.0, %v1541
        %v1543 = vpop.f32.mrb[0].mxu0
        %1544 = vmatprep.mubr.f32.mxu0 0.0
        %1545 = vmatmul.mubr.f32.gmra.mrb[0].mxu0 %v1400
        %v1546 = vpop.f32.mrb[0].mxu0
        %v1547 = vadd.f32 0.0, %v1546
        %v1548 = vpop.f32.mrb[0].mxu0
        %1549 = vdwg.mxu0
        %v1550 = vadd.f32 %v1320, %v1472
        %v1551 = vadd.f32 %v1321, %v1477
        %v1552 = vadd.f32 %v1322, %v1482
        %v1553 = vadd.f32 %v1323, %v1487
        %v1554 = vadd.f32 %v1324, %v1492
        %v1555 = vadd.f32 %v1325, %v1497
        %v1556 = vadd.f32 %v1326, %v1502
        %v1557 = vadd.f32 %v1327, %v1507
        %v1558 = vadd.f32 %v1328, %v1512
        %v1559 = vadd.f32 %v1329, %v1517
        %v1560 = vadd.f32 %v1330, %v1522
        %v1561 = vadd.f32 %v1331, %v1527
        %v1562 = vadd.f32 %v1332, %v1532
        %v1563 = vadd.f32 %v1333, %v1537
        %v1564 = vadd.f32 %v1334, %v1542
        %v1565 = vadd.f32 %v1335, %v1547
        %s1566 = sadd.s32 %s211, 2
        %s1567 = smul.u32 %s1566, 24
        %s1568 = scalar_lea.vmem %s209, %s1567
        %v1569 = vld [vmem:[%s1568] sm:$0xff]
        %v1570 = vld [vmem:[%s1568 + $0x8] sm:$0xff]
        %v1571 = vld [vmem:[%s1568 + $0x18] sm:$0xff]
        %v1572 = vld [vmem:[%s1568 + $0x20] sm:$0xff]
        %v1573 = vld [vmem:[%s1568 + $0x30] sm:$0xff]
        %v1574 = vld [vmem:[%s1568 + $0x38] sm:$0xff]
        %v1575 = vld [vmem:[%s1568 + $0x48] sm:$0xff]
        %v1576 = vld [vmem:[%s1568 + $0x50] sm:$0xff]
        %v1577 = vld [vmem:[%s1568 + $0x60] sm:$0xff]
        %v1578 = vld [vmem:[%s1568 + $0x68] sm:$0xff]
        %v1579 = vld [vmem:[%s1568 + $0x78] sm:$0xff]
        %v1580 = vld [vmem:[%s1568 + $0x80] sm:$0xff]
        %v1581 = vld [vmem:[%s1568 + $0x90] sm:$0xff]
        %v1582 = vld [vmem:[%s1568 + $0x98] sm:$0xff]
        %v1583 = vld [vmem:[%s1568 + $0xa8] sm:$0xff]
        %v1584 = vld [vmem:[%s1568 + $0xb0] sm:$0xff]
        %s1585 = scalar_lea.vmem %s1, 24
        %v1586 = vld [vmem:[%s1585] sm:$0xf]
        %v1588 = vsel %vm249, %v1569, 0
        %v1591 = vsel %vm249, %v1570, 0
        %v1594 = vsel %vm249, %v1571, 0
        %v1597 = vsel %vm249, %v1572, 0
        %v1600 = vsel %vm249, %v1573, 0
        %v1603 = vsel %vm249, %v1574, 0
        %v1606 = vsel %vm249, %v1575, 0
        %v1609 = vsel %vm249, %v1576, 0
        %v1612 = vsel %vm249, %v1577, 0
        %v1615 = vsel %vm249, %v1578, 0
        %v1618 = vsel %vm249, %v1579, 0
        %v1621 = vsel %vm249, %v1580, 0
        %v1624 = vsel %vm249, %v1581, 0
        %v1627 = vsel %vm249, %v1582, 0
        %v1630 = vsel %vm249, %v1583, 0
        %v1633 = vsel %vm249, %v1584, 0
        %v1636 = vsel %vm298, %v1586, 0
        %1638 = vmatprep.subr.mxu0 0.0
        %1639 = vmatpush1.msra.mxu0 %v1636
        %1640 = vmatprep.subr.mxu0 0.0
        %1641 = vmatpush1.msra.mxu0 0.0
        %1642 = vmatprep.subr.mxu0 0.0
        %1643 = vmatpush1.msra.mxu0 0.0
        %1644 = vmatprep.subr.mxu0 0.0
        %1645 = vmatpush1.msra.mxu0 0.0
        %1646 = vmatprep.subr.mxu0 0.0
        %1647 = vmatpush1.msra.mxu0 0.0
        %1648 = vmatprep.subr.mxu0 0.0
        %1649 = vmatpush1.msra.mxu0 0.0
        %1650 = vmatprep.subr.mxu0 0.0
        %1651 = vmatpush1.msra.mxu0 0.0
        %1652 = vmatprep.subr.mxu0 0.0
        %1653 = vmatpush1.msra.mxu0 0.0
        %1654 = vmatprep.subr.mxu0 0.0
        %1655 = vmatpush1.msra.mxu0 0.0
        %1656 = vmatprep.subr.mxu0 0.0
        %1657 = vmatpush1.msra.mxu0 0.0
        %1658 = vmatprep.subr.mxu0 0.0
        %1659 = vmatpush1.msra.mxu0 0.0
        %1660 = vmatprep.subr.mxu0 0.0
        %1661 = vmatpush1.msra.mxu0 0.0
        %1662 = vmatprep.subr.mxu0 0.0
        %1663 = vmatpush1.msra.mxu0 0.0
        %1664 = vmatprep.subr.mxu0 0.0
        %1665 = vmatpush1.msra.mxu0 0.0
        %1666 = vmatprep.subr.mxu0 0.0
        %1667 = vmatpush1.msra.mxu0 0.0
        %1668 = vmatprep.subr.mxu0 0.0
        %1669 = vmatpush1.msra.mxu0 0.0
        %1670 = vmatprep.subr.mxu0 0.0
        %1671 = vmatpush1.msra.mxu0 0.0
        %1672 = vmatprep.subr.mxu0 0.0
        %1673 = vmatpush1.msra.mxu0 0.0
        %1674 = vmatprep.subr.mxu0 0.0
        %1675 = vmatpush1.msra.mxu0 0.0
        %1676 = vmatprep.subr.mxu0 0.0
        %1677 = vmatpush1.msra.mxu0 0.0
        %1678 = vmatprep.subr.mxu0 0.0
        %1679 = vmatpush1.msra.mxu0 0.0
        %1680 = vmatprep.subr.mxu0 0.0
        %1681 = vmatpush1.msra.mxu0 0.0
        %1682 = vmatprep.subr.mxu0 0.0
        %1683 = vmatpush1.msra.mxu0 0.0
        %1684 = vmatprep.subr.mxu0 0.0
        %1685 = vmatpush1.msra.mxu0 0.0
        %1686 = vmatprep.subr.mxu0 0.0
        %1687 = vmatpush1.msra.mxu0 0.0
        %1688 = vmatprep.subr.mxu0 0.0
        %1689 = vmatpush1.msra.mxu0 0.0
        %1690 = vmatprep.subr.mxu0 0.0
        %1691 = vmatpush1.msra.mxu0 0.0
        %1692 = vmatprep.subr.mxu0 0.0
        %1693 = vmatpush1.msra.mxu0 0.0
        %1694 = vmatprep.subr.mxu0 0.0
        %1695 = vmatpush1.msra.mxu0 0.0
        %1696 = vmatprep.subr.mxu0 0.0
        %1697 = vmatpush1.msra.mxu0 0.0
        %1698 = vmatprep.subr.mxu0 0.0
        %1699 = vmatpush1.msra.mxu0 0.0
        %1700 = vmatprep.subr.mxu0 0.0
        %1701 = vmatpush1.msra.mxu0 0.0
        %1702 = vmatprep.mubr.f32.mxu0 0.0
        %1703 = vmatmul.mubr.f32.gmra.mrb[0].mxu0 %v1588
        %v1704 = vpop.f32.mrb[0].mxu0
        %v1705 = vadd.f32 0.0, %v1704
        %v1706 = vpop.f32.mrb[0].mxu0
        %1707 = vmatprep.mubr.f32.mxu0 0.0
        %1708 = vmatmul.mubr.f32.gmra.mrb[0].mxu0 %v1591
        %v1709 = vpop.f32.mrb[0].mxu0
        %v1710 = vadd.f32 0.0, %v1709
        %v1711 = vpop.f32.mrb[0].mxu0
        %1712 = vmatprep.mubr.f32.mxu0 0.0
        %1713 = vmatmul.mubr.f32.gmra.mrb[0].mxu0 %v1594
        %v1714 = vpop.f32.mrb[0].mxu0
        %v1715 = vadd.f32 0.0, %v1714
        %v1716 = vpop.f32.mrb[0].mxu0
        %1717 = vmatprep.mubr.f32.mxu0 0.0
        %1718 = vmatmul.mubr.f32.gmra.mrb[0].mxu0 %v1597
        %v1719 = vpop.f32.mrb[0].mxu0
        %v1720 = vadd.f32 0.0, %v1719
        %v1721 = vpop.f32.mrb[0].mxu0
        %1722 = vmatprep.mubr.f32.mxu0 0.0
        %1723 = vmatmul.mubr.f32.gmra.mrb[0].mxu0 %v1600
        %v1724 = vpop.f32.mrb[0].mxu0
        %v1725 = vadd.f32 0.0, %v1724
        %v1726 = vpop.f32.mrb[0].mxu0
        %1727 = vmatprep.mubr.f32.mxu0 0.0
        %1728 = vmatmul.mubr.f32.gmra.mrb[0].mxu0 %v1603
        %v1729 = vpop.f32.mrb[0].mxu0
        %v1730 = vadd.f32 0.0, %v1729
        %v1731 = vpop.f32.mrb[0].mxu0
        %1732 = vmatprep.mubr.f32.mxu0 0.0
        %1733 = vmatmul.mubr.f32.gmra.mrb[0].mxu0 %v1606
        %v1734 = vpop.f32.mrb[0].mxu0
        %v1735 = vadd.f32 0.0, %v1734
        %v1736 = vpop.f32.mrb[0].mxu0
        %1737 = vmatprep.mubr.f32.mxu0 0.0
        %1738 = vmatmul.mubr.f32.gmra.mrb[0].mxu0 %v1609
        %v1739 = vpop.f32.mrb[0].mxu0
        %v1740 = vadd.f32 0.0, %v1739
        %v1741 = vpop.f32.mrb[0].mxu0
        %1742 = vmatprep.mubr.f32.mxu0 0.0
        %1743 = vmatmul.mubr.f32.gmra.mrb[0].mxu0 %v1612
        %v1744 = vpop.f32.mrb[0].mxu0
        %v1745 = vadd.f32 0.0, %v1744
        %v1746 = vpop.f32.mrb[0].mxu0
        %1747 = vmatprep.mubr.f32.mxu0 0.0
        %1748 = vmatmul.mubr.f32.gmra.mrb[0].mxu0 %v1615
        %v1749 = vpop.f32.mrb[0].mxu0
        %v1750 = vadd.f32 0.0, %v1749
        %v1751 = vpop.f32.mrb[0].mxu0
        %1752 = vmatprep.mubr.f32.mxu0 0.0
        %1753 = vmatmul.mubr.f32.gmra.mrb[0].mxu0 %v1618
        %v1754 = vpop.f32.mrb[0].mxu0
        %v1755 = vadd.f32 0.0, %v1754
        %v1756 = vpop.f32.mrb[0].mxu0
        %1757 = vmatprep.mubr.f32.mxu0 0.0
        %1758 = vmatmul.mubr.f32.gmra.mrb[0].mxu0 %v1621
        %v1759 = vpop.f32.mrb[0].mxu0
        %v1760 = vadd.f32 0.0, %v1759
        %v1761 = vpop.f32.mrb[0].mxu0
        %1762 = vmatprep.mubr.f32.mxu0 0.0
        %1763 = vmatmul.mubr.f32.gmra.mrb[0].mxu0 %v1624
        %v1764 = vpop.f32.mrb[0].mxu0
        %v1765 = vadd.f32 0.0, %v1764
        %v1766 = vpop.f32.mrb[0].mxu0
        %1767 = vmatprep.mubr.f32.mxu0 0.0
        %1768 = vmatmul.mubr.f32.gmra.mrb[0].mxu0 %v1627
        %v1769 = vpop.f32.mrb[0].mxu0
        %v1770 = vadd.f32 0.0, %v1769
        %v1771 = vpop.f32.mrb[0].mxu0
        %1772 = vmatprep.mubr.f32.mxu0 0.0
        %1773 = vmatmul.mubr.f32.gmra.mrb[0].mxu0 %v1630
        %v1774 = vpop.f32.mrb[0].mxu0
        %v1775 = vadd.f32 0.0, %v1774
        %v1776 = vpop.f32.mrb[0].mxu0
        %1777 = vmatprep.mubr.f32.mxu0 0.0
        %1778 = vmatmul.mubr.f32.gmra.mrb[0].mxu0 %v1633
        %v1779 = vpop.f32.mrb[0].mxu0
        %v1780 = vadd.f32 0.0, %v1779
        %v1781 = vpop.f32.mrb[0].mxu0
        %1782 = vdwg.mxu0
        %v1783 = vadd.f32 %v1550, %v1705
        %v1784 = vadd.f32 %v1551, %v1710
        %v1785 = vadd.f32 %v1552, %v1715
        %v1786 = vadd.f32 %v1553, %v1720
        %v1787 = vadd.f32 %v1554, %v1725
        %v1788 = vadd.f32 %v1555, %v1730
        %v1789 = vadd.f32 %v1556, %v1735
        %v1790 = vadd.f32 %v1557, %v1740
        %v1791 = vadd.f32 %v1558, %v1745
        %v1792 = vadd.f32 %v1559, %v1750
        %v1793 = vadd.f32 %v1560, %v1755
        %v1794 = vadd.f32 %v1561, %v1760
        %v1795 = vadd.f32 %v1562, %v1765
        %v1796 = vadd.f32 %v1563, %v1770
        %v1797 = vadd.f32 %v1564, %v1775
        %v1798 = vadd.f32 %v1565, %v1780
        %v1799 = vld [vmem:[%s1568 + $0x1] sm:$0xff]
        %v1800 = vld [vmem:[%s1568 + $0x9] sm:$0xff]
        %v1801 = vld [vmem:[%s1568 + $0x19] sm:$0xff]
        %v1802 = vld [vmem:[%s1568 + $0x21] sm:$0xff]
        %v1803 = vld [vmem:[%s1568 + $0x31] sm:$0xff]
        %v1804 = vld [vmem:[%s1568 + $0x39] sm:$0xff]
        %v1805 = vld [vmem:[%s1568 + $0x49] sm:$0xff]
        %v1806 = vld [vmem:[%s1568 + $0x51] sm:$0xff]
        %v1807 = vld [vmem:[%s1568 + $0x61] sm:$0xff]
        %v1808 = vld [vmem:[%s1568 + $0x69] sm:$0xff]
        %v1809 = vld [vmem:[%s1568 + $0x79] sm:$0xff]
        %v1810 = vld [vmem:[%s1568 + $0x81] sm:$0xff]
        %v1811 = vld [vmem:[%s1568 + $0x91] sm:$0xff]
        %v1812 = vld [vmem:[%s1568 + $0x99] sm:$0xff]
        %v1813 = vld [vmem:[%s1568 + $0xa9] sm:$0xff]
        %v1814 = vld [vmem:[%s1568 + $0xb1] sm:$0xff]
        %s1815 = scalar_lea.vmem %s1, 28
        %v1816 = vld [vmem:[%s1815] sm:$0xf]
        %v1818 = vsel %vm249, %v1799, 0
        %v1821 = vsel %vm249, %v1800, 0
        %v1824 = vsel %vm249, %v1801, 0
        %v1827 = vsel %vm249, %v1802, 0
        %v1830 = vsel %vm249, %v1803, 0
        %v1833 = vsel %vm249, %v1804, 0
        %v1836 = vsel %vm249, %v1805, 0
        %v1839 = vsel %vm249, %v1806, 0
        %v1842 = vsel %vm249, %v1807, 0
        %v1845 = vsel %vm249, %v1808, 0
        %v1848 = vsel %vm249, %v1809, 0
        %v1851 = vsel %vm249, %v1810, 0
        %v1854 = vsel %vm249, %v1811, 0
        %v1857 = vsel %vm249, %v1812, 0
        %v1860 = vsel %vm249, %v1813, 0
        %v1863 = vsel %vm249, %v1814, 0
        %v1866 = vsel %vm298, %v1816, 0
        %1868 = vmatprep.subr.mxu0 0.0
        %1869 = vmatpush1.msra.mxu0 %v1866
        %1870 = vmatprep.subr.mxu0 0.0
        %1871 = vmatpush1.msra.mxu0 0.0
        %1872 = vmatprep.subr.mxu0 0.0
        %1873 = vmatpush1.msra.mxu0 0.0
        %1874 = vmatprep.subr.mxu0 0.0
        %1875 = vmatpush1.msra.mxu0 0.0
        %1876 = vmatprep.subr.mxu0 0.0
        %1877 = vmatpush1.msra.mxu0 0.0
        %1878 = vmatprep.subr.mxu0 0.0
        %1879 = vmatpush1.msra.mxu0 0.0
        %1880 = vmatprep.subr.mxu0 0.0
        %1881 = vmatpush1.msra.mxu0 0.0
        %1882 = vmatprep.subr.mxu0 0.0
        %1883 = vmatpush1.msra.mxu0 0.0
        %1884 = vmatprep.subr.mxu0 0.0
        %1885 = vmatpush1.msra.mxu0 0.0
        %1886 = vmatprep.subr.mxu0 0.0
        %1887 = vmatpush1.msra.mxu0 0.0
        %1888 = vmatprep.subr.mxu0 0.0
        %1889 = vmatpush1.msra.mxu0 0.0
        %1890 = vmatprep.subr.mxu0 0.0
        %1891 = vmatpush1.msra.mxu0 0.0
        %1892 = vmatprep.subr.mxu0 0.0
        %1893 = vmatpush1.msra.mxu0 0.0
        %1894 = vmatprep.subr.mxu0 0.0
        %1895 = vmatpush1.msra.mxu0 0.0
        %1896 = vmatprep.subr.mxu0 0.0
        %1897 = vmatpush1.msra.mxu0 0.0
        %1898 = vmatprep.subr.mxu0 0.0
        %1899 = vmatpush1.msra.mxu0 0.0
        %1900 = vmatprep.subr.mxu0 0.0
        %1901 = vmatpush1.msra.mxu0 0.0
        %1902 = vmatprep.subr.mxu0 0.0
        %1903 = vmatpush1.msra.mxu0 0.0
        %1904 = vmatprep.subr.mxu0 0.0
        %1905 = vmatpush1.msra.mxu0 0.0
        %1906 = vmatprep.subr.mxu0 0.0
        %1907 = vmatpush1.msra.mxu0 0.0
        %1908 = vmatprep.subr.mxu0 0.0
        %1909 = vmatpush1.msra.mxu0 0.0
        %1910 = vmatprep.subr.mxu0 0.0
        %1911 = vmatpush1.msra.mxu0 0.0
        %1912 = vmatprep.subr.mxu0 0.0
        %1913 = vmatpush1.msra.mxu0 0.0
        %1914 = vmatprep.subr.mxu0 0.0
        %1915 = vmatpush1.msra.mxu0 0.0
        %1916 = vmatprep.subr.mxu0 0.0
        %1917 = vmatpush1.msra.mxu0 0.0
        %1918 = vmatprep.subr.mxu0 0.0
        %1919 = vmatpush1.msra.mxu0 0.0
        %1920 = vmatprep.subr.mxu0 0.0
        %1921 = vmatpush1.msra.mxu0 0.0
        %1922 = vmatprep.subr.mxu0 0.0
        %1923 = vmatpush1.msra.mxu0 0.0
        %1924 = vmatprep.subr.mxu0 0.0
        %1925 = vmatpush1.msra.mxu0 0.0
        %1926 = vmatprep.subr.mxu0 0.0
        %1927 = vmatpush1.msra.mxu0 0.0
        %1928 = vmatprep.subr.mxu0 0.0
        %1929 = vmatpush1.msra.mxu0 0.0
        %1930 = vmatprep.subr.mxu0 0.0
        %1931 = vmatpush1.msra.mxu0 0.0
        %1932 = vmatprep.mubr.f32.mxu0 0.0
        %1933 = vmatmul.mubr.f32.gmra.mrb[0].mxu0 %v1818
        %v1934 = vpop.f32.mrb[0].mxu0
        %v1935 = vadd.f32 0.0, %v1934
        %v1936 = vpop.f32.mrb[0].mxu0
        %1937 = vmatprep.mubr.f32.mxu0 0.0
        %1938 = vmatmul.mubr.f32.gmra.mrb[0].mxu0 %v1821
        %v1939 = vpop.f32.mrb[0].mxu0
        %v1940 = vadd.f32 0.0, %v1939
        %v1941 = vpop.f32.mrb[0].mxu0
        %1942 = vmatprep.mubr.f32.mxu0 0.0
        %1943 = vmatmul.mubr.f32.gmra.mrb[0].mxu0 %v1824
        %v1944 = vpop.f32.mrb[0].mxu0
        %v1945 = vadd.f32 0.0, %v1944
        %v1946 = vpop.f32.mrb[0].mxu0
        %1947 = vmatprep.mubr.f32.mxu0 0.0
        %1948 = vmatmul.mubr.f32.gmra.mrb[0].mxu0 %v1827
        %v1949 = vpop.f32.mrb[0].mxu0
        %v1950 = vadd.f32 0.0, %v1949
        %v1951 = vpop.f32.mrb[0].mxu0
        %1952 = vmatprep.mubr.f32.mxu0 0.0
        %1953 = vmatmul.mubr.f32.gmra.mrb[0].mxu0 %v1830
        %v1954 = vpop.f32.mrb[0].mxu0
        %v1955 = vadd.f32 0.0, %v1954
        %v1956 = vpop.f32.mrb[0].mxu0
        %1957 = vmatprep.mubr.f32.mxu0 0.0
        %1958 = vmatmul.mubr.f32.gmra.mrb[0].mxu0 %v1833
        %v1959 = vpop.f32.mrb[0].mxu0
        %v1960 = vadd.f32 0.0, %v1959
        %v1961 = vpop.f32.mrb[0].mxu0
        %1962 = vmatprep.mubr.f32.mxu0 0.0
        %1963 = vmatmul.mubr.f32.gmra.mrb[0].mxu0 %v1836
        %v1964 = vpop.f32.mrb[0].mxu0
        %v1965 = vadd.f32 0.0, %v1964
        %v1966 = vpop.f32.mrb[0].mxu0
        %1967 = vmatprep.mubr.f32.mxu0 0.0
        %1968 = vmatmul.mubr.f32.gmra.mrb[0].mxu0 %v1839
        %v1969 = vpop.f32.mrb[0].mxu0
        %v1970 = vadd.f32 0.0, %v1969
        %v1971 = vpop.f32.mrb[0].mxu0
        %1972 = vmatprep.mubr.f32.mxu0 0.0
        %1973 = vmatmul.mubr.f32.gmra.mrb[0].mxu0 %v1842
        %v1974 = vpop.f32.mrb[0].mxu0
        %v1975 = vadd.f32 0.0, %v1974
        %v1976 = vpop.f32.mrb[0].mxu0
        %1977 = vmatprep.mubr.f32.mxu0 0.0
        %1978 = vmatmul.mubr.f32.gmra.mrb[0].mxu0 %v1845
        %v1979 = vpop.f32.mrb[0].mxu0
        %v1980 = vadd.f32 0.0, %v1979
        %v1981 = vpop.f32.mrb[0].mxu0
        %1982 = vmatprep.mubr.f32.mxu0 0.0
        %1983 = vmatmul.mubr.f32.gmra.mrb[0].mxu0 %v1848
        %v1984 = vpop.f32.mrb[0].mxu0
        %v1985 = vadd.f32 0.0, %v1984
        %v1986 = vpop.f32.mrb[0].mxu0
        %1987 = vmatprep.mubr.f32.mxu0 0.0
        %1988 = vmatmul.mubr.f32.gmra.mrb[0].mxu0 %v1851
        %v1989 = vpop.f32.mrb[0].mxu0
        %v1990 = vadd.f32 0.0, %v1989
        %v1991 = vpop.f32.mrb[0].mxu0
        %1992 = vmatprep.mubr.f32.mxu0 0.0
        %1993 = vmatmul.mubr.f32.gmra.mrb[0].mxu0 %v1854
        %v1994 = vpop.f32.mrb[0].mxu0
        %v1995 = vadd.f32 0.0, %v1994
        %v1996 = vpop.f32.mrb[0].mxu0
        %1997 = vmatprep.mubr.f32.mxu0 0.0
        %1998 = vmatmul.mubr.f32.gmra.mrb[0].mxu0 %v1857
        %v1999 = vpop.f32.mrb[0].mxu0
        %v2000 = vadd.f32 0.0, %v1999
        %v2001 = vpop.f32.mrb[0].mxu0
        %2002 = vmatprep.mubr.f32.mxu0 0.0
        %2003 = vmatmul.mubr.f32.gmra.mrb[0].mxu0 %v1860
        %v2004 = vpop.f32.mrb[0].mxu0
        %v2005 = vadd.f32 0.0, %v2004
        %v2006 = vpop.f32.mrb[0].mxu0
        %2007 = vmatprep.mubr.f32.mxu0 0.0
        %2008 = vmatmul.mubr.f32.gmra.mrb[0].mxu0 %v1863
        %v2009 = vpop.f32.mrb[0].mxu0
        %v2010 = vadd.f32 0.0, %v2009
        %v2011 = vpop.f32.mrb[0].mxu0
        %2012 = vdwg.mxu0
        %v2013 = vadd.f32 %v1783, %v1935
        %v2014 = vadd.f32 %v1784, %v1940
        %v2015 = vadd.f32 %v1785, %v1945
        %v2016 = vadd.f32 %v1786, %v1950
        %v2017 = vadd.f32 %v1787, %v1955
        %v2018 = vadd.f32 %v1788, %v1960
        %v2019 = vadd.f32 %v1789, %v1965
        %v2020 = vadd.f32 %v1790, %v1970
        %v2021 = vadd.f32 %v1791, %v1975
        %v2022 = vadd.f32 %v1792, %v1980
        %v2023 = vadd.f32 %v1793, %v1985
        %v2024 = vadd.f32 %v1794, %v1990
        %v2025 = vadd.f32 %v1795, %v1995
        %v2026 = vadd.f32 %v1796, %v2000
        %v2027 = vadd.f32 %v1797, %v2005
        %v2028 = vadd.f32 %v1798, %v2010
        %v2029 = vld [vmem:[%s1568 + $0x2] sm:$0xff]
        %v2030 = vld [vmem:[%s1568 + $0xa] sm:$0xff]
        %v2031 = vld [vmem:[%s1568 + $0x1a] sm:$0xff]
        %v2032 = vld [vmem:[%s1568 + $0x22] sm:$0xff]
        %v2033 = vld [vmem:[%s1568 + $0x32] sm:$0xff]
        %v2034 = vld [vmem:[%s1568 + $0x3a] sm:$0xff]
        %v2035 = vld [vmem:[%s1568 + $0x4a] sm:$0xff]
        %v2036 = vld [vmem:[%s1568 + $0x52] sm:$0xff]
        %v2037 = vld [vmem:[%s1568 + $0x62] sm:$0xff]
        %v2038 = vld [vmem:[%s1568 + $0x6a] sm:$0xff]
        %v2039 = vld [vmem:[%s1568 + $0x7a] sm:$0xff]
        %v2040 = vld [vmem:[%s1568 + $0x82] sm:$0xff]
        %v2041 = vld [vmem:[%s1568 + $0x92] sm:$0xff]
        %v2042 = vld [vmem:[%s1568 + $0x9a] sm:$0xff]
        %v2043 = vld [vmem:[%s1568 + $0xaa] sm:$0xff]
        %v2044 = vld [vmem:[%s1568 + $0xb2] sm:$0xff]
        %s2045 = scalar_lea.vmem %s1, 32
        %v2046 = vld [vmem:[%s2045] sm:$0xf]
        %v2048 = vsel %vm249, %v2029, 0
        %v2051 = vsel %vm249, %v2030, 0
        %v2054 = vsel %vm249, %v2031, 0
        %v2057 = vsel %vm249, %v2032, 0
        %v2060 = vsel %vm249, %v2033, 0
        %v2063 = vsel %vm249, %v2034, 0
        %v2066 = vsel %vm249, %v2035, 0
        %v2069 = vsel %vm249, %v2036, 0
        %v2072 = vsel %vm249, %v2037, 0
        %v2075 = vsel %vm249, %v2038, 0
        %v2078 = vsel %vm249, %v2039, 0
        %v2081 = vsel %vm249, %v2040, 0
        %v2084 = vsel %vm249, %v2041, 0
        %v2087 = vsel %vm249, %v2042, 0
        %v2090 = vsel %vm249, %v2043, 0
        %v2093 = vsel %vm249, %v2044, 0
        %v2096 = vsel %vm298, %v2046, 0
        %2098 = vmatprep.subr.mxu0 0.0
        %2099 = vmatpush1.msra.mxu0 %v2096
        %2100 = vmatprep.subr.mxu0 0.0
        %2101 = vmatpush1.msra.mxu0 0.0
        %2102 = vmatprep.subr.mxu0 0.0
        %2103 = vmatpush1.msra.mxu0 0.0
        %2104 = vmatprep.subr.mxu0 0.0
        %2105 = vmatpush1.msra.mxu0 0.0
        %2106 = vmatprep.subr.mxu0 0.0
        %2107 = vmatpush1.msra.mxu0 0.0
        %2108 = vmatprep.subr.mxu0 0.0
        %2109 = vmatpush1.msra.mxu0 0.0
        %2110 = vmatprep.subr.mxu0 0.0
        %2111 = vmatpush1.msra.mxu0 0.0
        %2112 = vmatprep.subr.mxu0 0.0
        %2113 = vmatpush1.msra.mxu0 0.0
        %2114 = vmatprep.subr.mxu0 0.0
        %2115 = vmatpush1.msra.mxu0 0.0
        %2116 = vmatprep.subr.mxu0 0.0
        %2117 = vmatpush1.msra.mxu0 0.0
        %2118 = vmatprep.subr.mxu0 0.0
        %2119 = vmatpush1.msra.mxu0 0.0
        %2120 = vmatprep.subr.mxu0 0.0
        %2121 = vmatpush1.msra.mxu0 0.0
        %2122 = vmatprep.subr.mxu0 0.0
        %2123 = vmatpush1.msra.mxu0 0.0
        %2124 = vmatprep.subr.mxu0 0.0
        %2125 = vmatpush1.msra.mxu0 0.0
        %2126 = vmatprep.subr.mxu0 0.0
        %2127 = vmatpush1.msra.mxu0 0.0
        %2128 = vmatprep.subr.mxu0 0.0
        %2129 = vmatpush1.msra.mxu0 0.0
        %2130 = vmatprep.subr.mxu0 0.0
        %2131 = vmatpush1.msra.mxu0 0.0
        %2132 = vmatprep.subr.mxu0 0.0
        %2133 = vmatpush1.msra.mxu0 0.0
        %2134 = vmatprep.subr.mxu0 0.0
        %2135 = vmatpush1.msra.mxu0 0.0
        %2136 = vmatprep.subr.mxu0 0.0
        %2137 = vmatpush1.msra.mxu0 0.0
        %2138 = vmatprep.subr.mxu0 0.0
        %2139 = vmatpush1.msra.mxu0 0.0
        %2140 = vmatprep.subr.mxu0 0.0
        %2141 = vmatpush1.msra.mxu0 0.0
        %2142 = vmatprep.subr.mxu0 0.0
        %2143 = vmatpush1.msra.mxu0 0.0
        %2144 = vmatprep.subr.mxu0 0.0
        %2145 = vmatpush1.msra.mxu0 0.0
        %2146 = vmatprep.subr.mxu0 0.0
        %2147 = vmatpush1.msra.mxu0 0.0
        %2148 = vmatprep.subr.mxu0 0.0
        %2149 = vmatpush1.msra.mxu0 0.0
        %2150 = vmatprep.subr.mxu0 0.0
        %2151 = vmatpush1.msra.mxu0 0.0
        %2152 = vmatprep.subr.mxu0 0.0
        %2153 = vmatpush1.msra.mxu0 0.0
        %2154 = vmatprep.subr.mxu0 0.0
        %2155 = vmatpush1.msra.mxu0 0.0
        %2156 = vmatprep.subr.mxu0 0.0
        %2157 = vmatpush1.msra.mxu0 0.0
        %2158 = vmatprep.subr.mxu0 0.0
        %2159 = vmatpush1.msra.mxu0 0.0
        %2160 = vmatprep.subr.mxu0 0.0
        %2161 = vmatpush1.msra.mxu0 0.0
        %2162 = vmatprep.mubr.f32.mxu0 0.0
        %2163 = vmatmul.mubr.f32.gmra.mrb[0].mxu0 %v2048
        %v2164 = vpop.f32.mrb[0].mxu0
        %v2165 = vadd.f32 0.0, %v2164
        %v2166 = vpop.f32.mrb[0].mxu0
        %2167 = vmatprep.mubr.f32.mxu0 0.0
        %2168 = vmatmul.mubr.f32.gmra.mrb[0].mxu0 %v2051
        %v2169 = vpop.f32.mrb[0].mxu0
        %v2170 = vadd.f32 0.0, %v2169
        %v2171 = vpop.f32.mrb[0].mxu0
        %2172 = vmatprep.mubr.f32.mxu0 0.0
        %2173 = vmatmul.mubr.f32.gmra.mrb[0].mxu0 %v2054
        %v2174 = vpop.f32.mrb[0].mxu0
        %v2175 = vadd.f32 0.0, %v2174
        %v2176 = vpop.f32.mrb[0].mxu0
        %2177 = vmatprep.mubr.f32.mxu0 0.0
        %2178 = vmatmul.mubr.f32.gmra.mrb[0].mxu0 %v2057
        %v2179 = vpop.f32.mrb[0].mxu0
        %v2180 = vadd.f32 0.0, %v2179
        %v2181 = vpop.f32.mrb[0].mxu0
        %2182 = vmatprep.mubr.f32.mxu0 0.0
        %2183 = vmatmul.mubr.f32.gmra.mrb[0].mxu0 %v2060
        %v2184 = vpop.f32.mrb[0].mxu0
        %v2185 = vadd.f32 0.0, %v2184
        %v2186 = vpop.f32.mrb[0].mxu0
        %2187 = vmatprep.mubr.f32.mxu0 0.0
        %2188 = vmatmul.mubr.f32.gmra.mrb[0].mxu0 %v2063
        %v2189 = vpop.f32.mrb[0].mxu0
        %v2190 = vadd.f32 0.0, %v2189
        %v2191 = vpop.f32.mrb[0].mxu0
        %2192 = vmatprep.mubr.f32.mxu0 0.0
        %2193 = vmatmul.mubr.f32.gmra.mrb[0].mxu0 %v2066
        %v2194 = vpop.f32.mrb[0].mxu0
        %v2195 = vadd.f32 0.0, %v2194
        %v2196 = vpop.f32.mrb[0].mxu0
        %2197 = vmatprep.mubr.f32.mxu0 0.0
        %2198 = vmatmul.mubr.f32.gmra.mrb[0].mxu0 %v2069
        %v2199 = vpop.f32.mrb[0].mxu0
        %v2200 = vadd.f32 0.0, %v2199
        %v2201 = vpop.f32.mrb[0].mxu0
        %2202 = vmatprep.mubr.f32.mxu0 0.0
        %2203 = vmatmul.mubr.f32.gmra.mrb[0].mxu0 %v2072
        %v2204 = vpop.f32.mrb[0].mxu0
        %v2205 = vadd.f32 0.0, %v2204
        %v2206 = vpop.f32.mrb[0].mxu0
        %2207 = vmatprep.mubr.f32.mxu0 0.0
        %2208 = vmatmul.mubr.f32.gmra.mrb[0].mxu0 %v2075
        %v2209 = vpop.f32.mrb[0].mxu0
        %v2210 = vadd.f32 0.0, %v2209
        %v2211 = vpop.f32.mrb[0].mxu0
        %2212 = vmatprep.mubr.f32.mxu0 0.0
        %2213 = vmatmul.mubr.f32.gmra.mrb[0].mxu0 %v2078
        %v2214 = vpop.f32.mrb[0].mxu0
        %v2215 = vadd.f32 0.0, %v2214
        %v2216 = vpop.f32.mrb[0].mxu0
        %2217 = vmatprep.mubr.f32.mxu0 0.0
        %2218 = vmatmul.mubr.f32.gmra.mrb[0].mxu0 %v2081
        %v2219 = vpop.f32.mrb[0].mxu0
        %v2220 = vadd.f32 0.0, %v2219
        %v2221 = vpop.f32.mrb[0].mxu0
        %2222 = vmatprep.mubr.f32.mxu0 0.0
        %2223 = vmatmul.mubr.f32.gmra.mrb[0].mxu0 %v2084
        %v2224 = vpop.f32.mrb[0].mxu0
        %v2225 = vadd.f32 0.0, %v2224
        %v2226 = vpop.f32.mrb[0].mxu0
        %2227 = vmatprep.mubr.f32.mxu0 0.0
        %2228 = vmatmul.mubr.f32.gmra.mrb[0].mxu0 %v2087
        %v2229 = vpop.f32.mrb[0].mxu0
        %v2230 = vadd.f32 0.0, %v2229
        %v2231 = vpop.f32.mrb[0].mxu0
        %2232 = vmatprep.mubr.f32.mxu0 0.0
        %2233 = vmatmul.mubr.f32.gmra.mrb[0].mxu0 %v2090
        %v2234 = vpop.f32.mrb[0].mxu0
        %v2235 = vadd.f32 0.0, %v2234
        %v2236 = vpop.f32.mrb[0].mxu0
        %2237 = vmatprep.mubr.f32.mxu0 0.0
        %2238 = vmatmul.mubr.f32.gmra.mrb[0].mxu0 %v2093
        %v2239 = vpop.f32.mrb[0].mxu0
        %v2240 = vadd.f32 0.0, %v2239
        %v2241 = vpop.f32.mrb[0].mxu0
        %2242 = vdwg.mxu0
        %v2243 = vadd.f32 %v2013, %v2165
        %v2244 = vadd.f32 %v2014, %v2170
        %v2245 = vadd.f32 %v2015, %v2175
        %v2246 = vadd.f32 %v2016, %v2180
        %v2247 = vadd.f32 %v2017, %v2185
        %v2248 = vadd.f32 %v2018, %v2190
        %v2249 = vadd.f32 %v2019, %v2195
        %v2250 = vadd.f32 %v2020, %v2200
        %v2251 = vadd.f32 %v2021, %v2205
        %v2252 = vadd.f32 %v2022, %v2210
        %v2253 = vadd.f32 %v2023, %v2215
        %v2254 = vadd.f32 %v2024, %v2220
        %v2255 = vadd.f32 %v2025, %v2225
        %v2256 = vadd.f32 %v2026, %v2230
        %v2257 = vadd.f32 %v2027, %v2235
        %v2258 = vadd.f32 %v2028, %v2240
        %v2259 = vld [vmem:[%s2] sm:$0x1]
        %v2261 = vlaneseq
        %v2262 = vshrl.u32 %v2261, 7
        %v2263 = vsub.s32 0, %v2262
        %v2264 = vrot.slane %v2259, %v2263
        %v2266 = vmul.f32 %v2243, %v2264
        %v2267 = vmul.f32 %v2244, %v2264
        %v2268 = vmul.f32 %v2245, %v2264
        %v2269 = vmul.f32 %v2246, %v2264
        %v2270 = vmul.f32 %v2247, %v2264
        %v2271 = vmul.f32 %v2248, %v2264
        %v2272 = vmul.f32 %v2249, %v2264
        %v2273 = vmul.f32 %v2250, %v2264
        %v2274 = vmul.f32 %v2251, %v2264
        %v2275 = vmul.f32 %v2252, %v2264
        %v2276 = vmul.f32 %v2253, %v2264
        %v2277 = vmul.f32 %v2254, %v2264
        %v2278 = vmul.f32 %v2255, %v2264
        %v2279 = vmul.f32 %v2256, %v2264
        %v2280 = vmul.f32 %v2257, %v2264
        %v2281 = vmul.f32 %v2258, %v2264
        %v2282 = vld [vmem:[%s3] sm:$0x1]
        %v2284 = vlaneseq
        %v2285 = vshrl.u32 %v2284, 7
        %v2286 = vsub.s32 0, %v2285
        %v2287 = vrot.slane %v2282, %v2286
        %v2289 = vadd.f32 %v2266, %v2287
        %v2290 = vadd.f32 %v2267, %v2287
        %v2291 = vadd.f32 %v2268, %v2287
        %v2292 = vadd.f32 %v2269, %v2287
        %v2293 = vadd.f32 %v2270, %v2287
        %v2294 = vadd.f32 %v2271, %v2287
        %v2295 = vadd.f32 %v2272, %v2287
        %v2296 = vadd.f32 %v2273, %v2287
        %v2297 = vadd.f32 %v2274, %v2287
        %v2298 = vadd.f32 %v2275, %v2287
        %v2299 = vadd.f32 %v2276, %v2287
        %v2300 = vadd.f32 %v2277, %v2287
        %v2301 = vadd.f32 %v2278, %v2287
        %v2302 = vadd.f32 %v2279, %v2287
        %v2303 = vadd.f32 %v2280, %v2287
        %v2304 = vadd.f32 %v2281, %v2287
        %v2305 = vmax.f32 %v2289, 0.0
        %v2306 = vmax.f32 %v2290, 0.0
        %v2307 = vmax.f32 %v2291, 0.0
        %v2308 = vmax.f32 %v2292, 0.0
        %v2309 = vmax.f32 %v2293, 0.0
        %v2310 = vmax.f32 %v2294, 0.0
        %v2311 = vmax.f32 %v2295, 0.0
        %v2312 = vmax.f32 %v2296, 0.0
        %v2313 = vmax.f32 %v2297, 0.0
        %v2314 = vmax.f32 %v2298, 0.0
        %v2315 = vmax.f32 %v2299, 0.0
        %v2316 = vmax.f32 %v2300, 0.0
        %v2317 = vmax.f32 %v2301, 0.0
        %v2318 = vmax.f32 %v2302, 0.0
        %v2319 = vmax.f32 %v2303, 0.0
        %v2320 = vmax.f32 %v2304, 0.0
        %2321 = vst [vmem:[%s204] sm:$0xff] %v2305
        %2322 = vst [vmem:[%s204 + $0x8] sm:$0xff] %v2306
        %2323 = vst [vmem:[%s204 + $0x10] sm:$0xff] %v2307
        %2324 = vst [vmem:[%s204 + $0x18] sm:$0xff] %v2308
        %2325 = vst [vmem:[%s204 + $0x20] sm:$0xff] %v2309
        %2326 = vst [vmem:[%s204 + $0x28] sm:$0xff] %v2310
        %2327 = vst [vmem:[%s204 + $0x30] sm:$0xff] %v2311
        %2328 = vst [vmem:[%s204 + $0x38] sm:$0xff] %v2312
        %2329 = vst [vmem:[%s204 + $0x40] sm:$0xff] %v2313
        %2330 = vst [vmem:[%s204 + $0x48] sm:$0xff] %v2314
        %2331 = vst [vmem:[%s204 + $0x50] sm:$0xff] %v2315
        %2332 = vst [vmem:[%s204 + $0x58] sm:$0xff] %v2316
        %2333 = vst [vmem:[%s204 + $0x60] sm:$0xff] %v2317
        %2334 = vst [vmem:[%s204 + $0x68] sm:$0xff] %v2318
        %2335 = vst [vmem:[%s204 + $0x70] sm:$0xff] %v2319
        %2336 = vst [vmem:[%s204 + $0x78] sm:$0xff] %v2320
        %s2337 = sand.u32 %s129, 1
        %s2338 = scalar_lea.sflag [#allocation3], %s2337
        %s2339 = sand.u32 %s129, 1
        %s2340 = smul.addr %s2339, 128
        %s2341 = scalar_lea.vmem [#allocation2], %s2340
        // Predicated region
        $region37: #{tpu_custom_call.1} parent=35 // pred_check
          %p2342 = pneg %p139
        $region38: #{tpu_custom_call.1} parent=35 // pred_check_branch
          %2344 = sbr.rel (%p2342) target = $region40
        $region39: #{tpu_custom_call.1} parent=35 // pred_region
          %s2345 = smul.u32 8, %s23
          %s2347 = ssub.s32 2048, 2048
          %2348 = vsyncadd %s2338, %s2347
          %s2349 = smul.addr %s2345, 2
          %s2350 = smul.addr %s22, 32
          %s2351 = sadd.s32 %s2349, %s2350
          %s2352 = smul.addr %s2351, 128
          %s2353 = scalar_lea.hbm %s4, %s2352
          %s2354 = sshll.u32 %s2341, 4
          %s2355 = int_to_ptr.vmem [resolvable:$true] %s2354
          %2360 = dma.vmem_to_hbm [thread:$0]  %s2355, 2048, %s2353, %s2338, 128, 128, 8
        $region40: #{tpu_custom_call.1} parent=35 // pred_fallthru
          _
      $region36: #{tpu_custom_call.1} parent=5 // pred_fallthru
        _
      %p2361 = scmp.le.s32.totalorder 2, %s13
      // Predicated region
      $region41: #{tpu_custom_call.1} parent=5 // pred_check
        %p2362 = pneg %p2361
      $region42: #{tpu_custom_call.1} parent=5 // pred_check_branch
        %2364 = sbr.rel (%p2362) target = $region44
      $region43: #{tpu_custom_call.1} parent=5 // pred_region
        %s2365 = ssub.s32 %s13, 2
        // Predicated region
        $region45: #{tpu_custom_call.1} parent=43 // pred_check
          %p2366 = pneg %p145
        $region46: #{tpu_custom_call.1} parent=43 // pred_check_branch
          %2368 = sbr.rel (%p2366) target = $region48
        $region47: #{tpu_custom_call.1} parent=43 // pred_region
          %s2369 = sand.u32 %s130, 1
          %s2370 = scalar_lea.sflag [#allocation3], %s2369
          %s2371 = sand.u32 %s130, 1
          %s2372 = smul.addr %s2371, 128
          %s2373 = scalar_lea.vmem [#allocation2], %s2372
          %2374 = dma.done %s2370, 2048
        $region48: #{tpu_custom_call.1} parent=43 // pred_fallthru
          _
      $region44: #{tpu_custom_call.1} parent=5 // pred_fallthru
        _
    $region6: #{tpu_custom_call.1} parent=1 // loop_footer
      %s17 = sadd.s32 1, %s13
    $region7: #{tpu_custom_call.1} parent=1 // loop_footer_branch
      %12 = sbr.rel target = $region3
    $region8: #{tpu_custom_call.1} parent=1 // loop_exit
      _
    %2375 = vsyncpa [#allocation3], 1
    %s2376 = scalar_lea.sflag [#allocation3], 1
    %2377 = vsyncpa %s2376, 1

</llo_original>
